<compile_context>
chip_gen: v7x
topology: tpu7x:2x2x1
jax: 0.10.0
libtpu: 0.0.40
codegen_flags: <defaults>
</compile_context>

<pallas_src>
from functools import partial

import jax
import jax.numpy as jnp
from jax.experimental import pallas as pl
from jax.experimental.pallas import tpu as pltpu


def _round_up(x, m):
    return (x + m - 1) // m * m


def _netd_pixel_kernel(x_ref, w1_ref, w2_ref, w3_ref, loss_ref, *,
                       target, hw, tile_pix, needs_mask):
    # x_ref    : (1, C1, TPIX)  compute_dtype  pixel tile, channels on sublanes
    # w1_ref   : (C1, C1)       compute_dtype  conv1 weight, native (out, in)
    # w2_ref   : (C2, C1)       compute_dtype  conv2 weight, native (out, in)
    # w3_ref   : (C2, 1)        float32        conv3 weight as a column
    # loss_ref : (1, 1, TPIX)   float32        per-pixel BCE loss (masked)
    x = x_ref[0]                                                  # (C1, TPIX)

    # conv1 (1x1) + ReLU : (C1, C1) @ (C1, TPIX), f32 accumulation on the MXU.
    h1 = jnp.maximum(
        jnp.dot(w1_ref[...], x, preferred_element_type=jnp.float32), 0.0)
    # conv2 (1x1) + ReLU : (C2, C1) @ (C1, TPIX)
    h2 = jnp.maximum(
        jnp.dot(w2_ref[...], h1.astype(x.dtype),
                preferred_element_type=jnp.float32), 0.0)         # (C2, TPIX)

    # conv3 (1x1, single output channel): VPU multiply + sublane reduction
    # instead of burning a full MXU pass on an M=1 matmul.
    z = jnp.sum(h2 * w3_ref[...], axis=0, keepdims=True)          # (1, TPIX)

    # BCEWithLogitsLoss against constant target t (numerically stable form):
    #   l(z) = max(z, 0) - z * t + log(1 + exp(-|z|))
    per = jnp.maximum(z, 0.0) - z * target + jnp.log1p(jnp.exp(-jnp.abs(z)))

    if needs_mask:
        # Zero out padded pixel columns so the wrapper-side mean stays unbiased.
        col = (jax.lax.broadcasted_iota(jnp.int32, (1, tile_pix), 1)
               + pl.program_id(1) * tile_pix)
        per = jnp.where(col < hw, per, 0.0)

    loss_ref[0] = per


def netd_pixel_forward(x_nchw, w1, w2, w3, target, *,
                       tile_pix=512, compute_dtype=jnp.bfloat16):
    """Forward pass of netD_pixel with context=False. Returns the scalar BCE loss.

    x_nchw : (B, C1, H, W) float32   (C1 = 256 + n_class)
    w1     : (C1, C1)      float32   conv1 weight, squeezed from (C1, C1, 1, 1)
    w2     : (C2, C1)      float32   conv2 weight (C2 = 128)
    w3     : (1, C2)       float32   conv3 weight
    target : python float in {0, 1, 0.1, 0.9}

    GradientReversal is the identity in the forward pass (it only flips
    gradients), so it is a no-op here.
    """
    assert target in (0.0, 1.0, 0.1, 0.9)
    B, C1, H, W = x_nchw.shape
    C2 = w2.shape[0]
    HW = H * W
    P = B * HW                                   # number of logits (mean denom)

    # Tile over the pixel (lane) axis; cap the tile at the (128-padded) H*W.
    tile_pix = int(max(128, min(tile_pix, _round_up(HW, 128))))
    hw_pad = _round_up(HW, tile_pix)
    ntp = hw_pad // tile_pix

    # NCHW -> (B, C1, H*W): trailing-dim reshape only, no transpose copy in HBM.
    x3 = x_nchw.reshape(B, C1, HW).astype(compute_dtype)
    if hw_pad != HW:
        x3 = jnp.pad(x3, ((0, 0), (0, 0), (0, hw_pad - HW)))

    w1c = w1.astype(compute_dtype)               # native (out, in): no .T anywhere
    w2c = w2.astype(compute_dtype)
    w3col = w3.reshape(C2, 1).astype(jnp.float32)

    kernel = partial(_netd_pixel_kernel,
                     target=float(target), hw=HW, tile_pix=tile_pix,
                     needs_mask=(hw_pad != HW))

    per_pixel = pl.pallas_call(
        kernel,
        out_shape=jax.ShapeDtypeStruct((B, 1, hw_pad), jnp.float32),
        grid_spec=pltpu.PrefetchScalarGridSpec(
            num_scalar_prefetch=0,
            grid=(B, ntp),
            in_specs=[
                pl.BlockSpec((1, C1, tile_pix), lambda b, j: (b, 0, j)),
                pl.BlockSpec((C1, C1), lambda b, j: (0, 0)),
                pl.BlockSpec((C2, C1), lambda b, j: (0, 0)),
                pl.BlockSpec((C2, 1), lambda b, j: (0, 0)),
            ],
            out_specs=pl.BlockSpec((1, 1, tile_pix), lambda b, j: (b, 0, j)),
        ),
        compiler_params=pltpu.CompilerParams(
            # No carried state: every grid point writes a disjoint output block,
            # so both axes are parallel (uses both TensorCores on v7x).
            dimension_semantics=("parallel", "parallel"),
        ),
    )(x3, w1c, w2c, w3col)

    return jnp.sum(per_pixel) / jnp.float32(P)


def _reference_forward(x_nchw, w1, w2, w3, target):
    """Pure-JAX f32 reference mirroring the PyTorch forward (context=False)."""
    B, C1, H, W = x_nchw.shape
    xp = jnp.transpose(x_nchw, (0, 2, 3, 1)).reshape(-1, C1)
    h1 = jax.nn.relu(xp @ w1.T)
    h2 = jax.nn.relu(h1 @ w2.T)
    z = h2 @ w3.T
    t = jnp.full_like(z, target)
    per = jnp.maximum(z, 0.0) - z * t + jnp.log1p(jnp.exp(-jnp.abs(z)))
    return jnp.mean(per)


if __name__ == "__main__":
    # Small shapes consistent with the module: n_class=8 -> C1 = 256 + 8 = 264.
    n_class = 8
    C1 = 256 + n_class
    C2 = 128
    B, H, W = 2, 16, 16
    target = 1.0   # must be one of {0, 1, 0.1, 0.9}

    key = jax.random.PRNGKey(0)
    kx, k1, k2, k3 = jax.random.split(key, 4)

    x = jax.random.normal(kx, (B, C1, H, W), dtype=jnp.float32)
    # normal_init(m, 0, 0.01): weight ~ N(0, 0.01); 1x1 conv weights squeezed
    # from (out, in, 1, 1) to (out, in).
    w1 = 0.01 * jax.random.normal(k1, (C1, C1), dtype=jnp.float32)
    w2 = 0.01 * jax.random.normal(k2, (C2, C1), dtype=jnp.float32)
    w3 = 0.01 * jax.random.normal(k3, (1, C2), dtype=jnp.float32)

    # TODO(synk): context=True branch (avg_pool feat output) not implemented;
    # the default constructor uses context=False so forward returns only the loss.

    ref = _reference_forward(x, w1, w2, w3, target)

    # Exact-precision path (f32 end to end) -- tight check.
    loss_f32 = netd_pixel_forward(x, w1, w2, w3, target,
                                  compute_dtype=jnp.float32)
    loss_f32 = jax.block_until_ready(loss_f32)
    assert jnp.allclose(loss_f32, ref, rtol=1e-4, atol=1e-5), (loss_f32, ref)

    # Fast path (bf16 matmuls, f32 accumulation / epilogue) -- relaxed check.
    loss_bf16 = netd_pixel_forward(x, w1, w2, w3, target,
                                   compute_dtype=jnp.bfloat16)
    loss_bf16 = jax.block_until_ready(loss_bf16)
    assert jnp.allclose(loss_bf16, ref, rtol=2e-3, atol=2e-3), (loss_bf16, ref)

    print("KERNEL_OK")
</pallas_src>

<mosaic_0001>
module attributes {stable_mosaic.version = 11 : i64} {
  func.func @_netd_pixel_kernel(%arg0: i32, %arg1: i32, %arg2: memref<1x264x256xf32, #tpu.memory_space<vmem>>, %arg3: memref<264x264xf32, #tpu.memory_space<vmem>>, %arg4: memref<128x264xf32, #tpu.memory_space<vmem>>, %arg5: memref<128x1xf32, #tpu.memory_space<vmem>>, %arg6: memref<1x1x256xf32, #tpu.memory_space<vmem>>) attributes {dimension_semantics = [#tpu.dimension_semantics<parallel>, #tpu.dimension_semantics<parallel>], iteration_bounds = array<i64: 2, 1>, scalar_prefetch = 0 : i64, scratch_operands = 0 : i64, tpu.core_type = #tpu.core_type<tc>, window_params = [{transform_indices = @transform_0, window_bounds = array<i64: 1, 264, 256>}, {pipeline_mode = #tpu.pipeline_mode<synchronous>, transform_indices = @transform_1, window_bounds = array<i64: 264, 264>}, {pipeline_mode = #tpu.pipeline_mode<synchronous>, transform_indices = @transform_2, window_bounds = array<i64: 128, 264>}, {pipeline_mode = #tpu.pipeline_mode<synchronous>, transform_indices = @transform_3, window_bounds = array<i64: 128, 1>}, {transform_indices = @transform_4, window_bounds = array<i64: 1, 1, 256>}]} {
    %c0 = arith.constant 0 : index
    %c0_0 = arith.constant 0 : index
    %c0_1 = arith.constant 0 : index
    %0 = vector.load %arg2[%c0, %c0_0, %c0_1] : memref<1x264x256xf32, #tpu.memory_space<vmem>>, vector<1x264x256xf32>
    %1 = vector.shape_cast %0 : vector<1x264x256xf32> to vector<264x256xf32>
    %c0_2 = arith.constant 0 : index
    %c0_3 = arith.constant 0 : index
    %2 = vector.load %arg3[%c0_2, %c0_3] : memref<264x264xf32, #tpu.memory_space<vmem>>, vector<264x264xf32>
    %cst = arith.constant dense<0.000000e+00> : vector<264x256xf32>
    %3 = tpu.matmul %2, %1, %cst {dimension_numbers = #tpu.dot_dimension_numbers<[1], [0], [0], [1], [0, 0, 1, 1], [], []>} : vector<264x264xf32>, vector<264x256xf32>, vector<264x256xf32> -> vector<264x256xf32>
    %cst_4 = arith.constant 0.000000e+00 : f32
    %4 = vector.broadcast %cst_4 : f32 to vector<264x256xf32>
    %5 = arith.maximumf %3, %4 : vector<264x256xf32>
    %c0_5 = arith.constant 0 : index
    %c0_6 = arith.constant 0 : index
    %6 = vector.load %arg4[%c0_5, %c0_6] : memref<128x264xf32, #tpu.memory_space<vmem>>, vector<128x264xf32>
    %cst_7 = arith.constant dense<0.000000e+00> : vector<128x256xf32>
    %7 = tpu.matmul %6, %5, %cst_7 {dimension_numbers = #tpu.dot_dimension_numbers<[1], [0], [0], [1], [0, 0, 1, 1], [], []>} : vector<128x264xf32>, vector<264x256xf32>, vector<128x256xf32> -> vector<128x256xf32>
    %cst_8 = arith.constant 0.000000e+00 : f32
    %8 = vector.broadcast %cst_8 : f32 to vector<128x256xf32>
    %9 = arith.maximumf %7, %8 : vector<128x256xf32>
    %c0_9 = arith.constant 0 : index
    %c0_10 = arith.constant 0 : index
    %10 = vector.load %arg5[%c0_9, %c0_10] : memref<128x1xf32, #tpu.memory_space<vmem>>, vector<128x1xf32>
    %11 = vector.broadcast %10 : vector<128x1xf32> to vector<128x256xf32>
    %12 = arith.mulf %9, %11 : vector<128x256xf32>
    %cst_11 = arith.constant dense<0.000000e+00> : vector<256xf32>
    %13 = vector.multi_reduction <add>, %12, %cst_11 [0] : vector<128x256xf32> to vector<256xf32>
    %14 = vector.shape_cast %13 : vector<256xf32> to vector<1x256xf32>
    %cst_12 = arith.constant 0.000000e+00 : f32
    %15 = vector.broadcast %cst_12 : f32 to vector<1x256xf32>
    %16 = arith.maximumf %14, %15 : vector<1x256xf32>
    %cst_13 = arith.constant 1.000000e+00 : f32
    %17 = vector.broadcast %cst_13 : f32 to vector<1x256xf32>
    %18 = arith.mulf %14, %17 : vector<1x256xf32>
    %19 = arith.subf %16, %18 : vector<1x256xf32>
    %20 = math.absf %14 : vector<1x256xf32>
    %cst_14 = arith.constant 0.000000e+00 : f32
    %21 = vector.broadcast %cst_14 : f32 to vector<1x256xf32>
    %22 = arith.subf %21, %20 : vector<1x256xf32>
    %23 = math.exp %22 : vector<1x256xf32>
    %24 = math.log1p %23 : vector<1x256xf32>
    %25 = arith.addf %19, %24 : vector<1x256xf32>
    %c0_15 = arith.constant 0 : index
    %c0_16 = arith.constant 0 : index
    %c0_17 = arith.constant 0 : index
    %26 = vector.load %arg6[%c0_15, %c0_16, %c0_17] : memref<1x1x256xf32, #tpu.memory_space<vmem>>, vector<1x1x256xf32>
    %27 = vector.shape_cast %26 : vector<1x1x256xf32> to vector<1x256xf32>
    %28 = vector.shape_cast %25 : vector<1x256xf32> to vector<1x1x256xf32>
    tpu.vector_store %arg6[%c0_15, %c0_16, %c0_17], %28 {strides = array<i32>} : memref<1x1x256xf32, #tpu.memory_space<vmem>>, vector<1x1x256xf32>,
    return
  }
  func.func @transform_0(%arg0: i32, %arg1: i32) -> (i32, i32, i32) {
    %c0_i32 = arith.constant 0 : i32
    %c0_i32_0 = arith.constant 0 : i32
    return %arg0, %c0_i32, %arg1 : i32, i32, i32
  }
  func.func @transform_1(%arg0: i32, %arg1: i32) -> (i32, i32) {
    %c0_i32 = arith.constant 0 : i32
    %c0_i32_0 = arith.constant 0 : i32
    %c0_i32_1 = arith.constant 0 : i32
    return %c0_i32, %c0_i32_0 : i32, i32
  }
  func.func @transform_2(%arg0: i32, %arg1: i32) -> (i32, i32) {
    %c0_i32 = arith.constant 0 : i32
    %c0_i32_0 = arith.constant 0 : i32
    %c0_i32_1 = arith.constant 0 : i32
    return %c0_i32, %c0_i32_0 : i32, i32
  }
  func.func @transform_3(%arg0: i32, %arg1: i32) -> (i32, i32) {
    %c0_i32 = arith.constant 0 : i32
    %c0_i32_0 = arith.constant 0 : i32
    %c0_i32_1 = arith.constant 0 : i32
    return %c0_i32, %c0_i32_0 : i32, i32
  }
  func.func @transform_4(%arg0: i32, %arg1: i32) -> (i32, i32, i32) {
    %c0_i32 = arith.constant 0 : i32
    %c0_i32_0 = arith.constant 0 : i32
    return %arg0, %c0_i32, %arg1 : i32, i32, i32
  }
}

</mosaic_0001>

<llo_original>
// kernel: tpu_custom_call.1
$region0: #{tpu_custom_call.1}
  #allocation0 [shape = 'u32[]', space=smem, size = 0x4, offset = 0x4, fixed_abs, tag = 'smem constant byte address 0x4 - core index']
  #allocation1 [shape = 'u32[144,128]{1,0:T(1,128)}', space=vmem, size = 0x12000, scoped, tag = 'internal scratch']
  %s0 = inlined_call_operand.hbm [shape: f32[2,264,256], index: 0, kind: input, shape index: {}]
  %s1 = inlined_call_operand.hbm [shape: f32[264,264], index: 1, kind: input, shape index: {}]
  %s2 = inlined_call_operand.vmem [shape: f32[128,264], index: 2, kind: input, shape index: {}]
  %s3 = inlined_call_operand.vmem [shape: f32[128,1], index: 3, kind: input, shape index: {}]
  %s4 = inlined_call_operand.hbm [shape: f32[2,1,256], index: 4, kind: output, shape index: {}]
  %s5 = sld [smem:[#allocation0]]
  $region57: #{tpu_custom_call.1} parent=0
    _
  %s7 = ssub.s32 1, %s5
  %s8 = scalar_select 0, %s7, %s5
  $region1: #{tpu_custom_call.1} parent=0
    #allocation2 [shape = 'u8[540672]{0}', space=vmem, size = 0x84000, scoped, tag = 'input window, operand 0']
    #allocation3 [shape = 's32[2]{0}', space=sflag, size = 0x8, scoped, tag = 'scoped memory for tpu_custom_call.1']
    #allocation4 [shape = 's32[2]{0}', space=sflag, size = 0x8, scoped, tag = 'scoped memory for tpu_custom_call.1']
    #allocation5 [shape = 'u8[405504]{0}', space=vmem, size = 0x63000, scoped, tag = 'input window, operand 1, single buffered']
    #allocation6 [shape = 's32[1]{0}', space=sflag, size = 0x4, scoped, tag = 'scoped memory for tpu_custom_call.1']
    #allocation7 [shape = 'u8[2048]{0}', space=vmem, size = 0x800, scoped, tag = 'output window, operand 0']
    %9 = vsyncpa [#allocation3], 0
    %s10 = scalar_lea.sflag [#allocation3], 1
    %11 = vsyncpa %s10, 0
    %12 = vsyncpa [#allocation6], 0
    %13 = vsyncpa [#allocation4], 0
    %s14 = scalar_lea.sflag [#allocation4], 1
    %15 = vsyncpa %s14, 0
    loop: start=0, step=1, limit=4
    $region2: #{tpu_custom_call.1} parent=1 // loop_pre_header
      _
    $region3: #{tpu_custom_call.1} parent=1 // loop_header
      %s17 = sphi 0, %s21
      %p18 = scmp.ge.s32.totalorder %s17, 4
      %s24 = sphi 0, %s36
      %s25 = sphi 0, %s32
      %s26 = sphi 0, %s24
      %s27 = sphi 0, %s25
      %s28 = sphi 0, %s26
      %s29 = sphi 0, %s27
      %s41 = sphi 0, %s43
      %s44 = sphi 0, %s41
      %s45 = sphi 0, %s44
      %s61 = sphi 0, %s45
      %s65 = sphi 0, %s65
      %s67 = sphi 0, %s65
      %s68 = sphi 0, %s67
      %s82 = sphi 0, %s68
      %s86 = sphi 0, %s86
      %s88 = sphi 0, %s86
      %s89 = sphi 0, %s88
      %s103 = sphi 0, %s89
      %s107 = sphi 0, %s107
      %s109 = sphi 0, %s107
      %s110 = sphi 0, %s109
      %s124 = sphi 0, %s110
      %s132 = sphi 0, %s134
      %s135 = sphi 0, %s132
      %s136 = sphi 0, %s135
      %s152 = sphi 0, %s136
    $region4: #{tpu_custom_call.1} parent=1 // loop_header_branch
      %20 = sbr.rel (%p18) target = $region8
    $region5: #{tpu_custom_call.1} parent=1 // loop_body
      %s22 = ssub.s32 %s17, 1
      %s23 = ssub.s32 %s17, 2
      %s30 = sadd.s32 1, %s25
      %p31 = scmp.ge.s32.totalorder %s30, 1
      %s32 = scalar_select %p31, 0, %s30
      %s33 = sadd.s32 1, %s24
      %s34 = scalar_select %p31, %s33, %s24
      %p35 = scmp.ge.s32.totalorder %s34, 2
      %s36 = scalar_select %p35, 0, %s34
      %s37 = ssub.s32 %s24, %s36
      %s38 = ssub.s32 %s25, %s32
      %s39 = sor.u32 %s37, %s38
      %p40 = scmp.eq.s32.totalorder %s39, 0
      %s42 = sadd.s32 %s41, 1
      %s43 = scalar_select %p40, %s41, %s42
      %p46 = pneg %p40
      %p47 = scmp.eq.s32.totalorder %s17, 1
      %p48 = por %p46, %p47
      %p49 = scmp.ne.s32.totalorder %s41, %s44
      %p50 = scmp.eq.s32.totalorder %s17, 0
      %p51 = por %p49, %p50
      %p52 = scmp.ne.s32.totalorder %s41, %s44
      %p53 = scmp.eq.s32.totalorder %s22, 1
      %p54 = por %p52, %p53
      %p55 = scmp.ne.s32.totalorder %s44, %s45
      %p56 = scmp.eq.s32.totalorder %s22, 0
      %p57 = por %p55, %p56
      %p58 = scmp.ne.s32.totalorder %s44, %s45
      %p59 = scmp.eq.s32.totalorder %s23, 1
      %p60 = por %p58, %p59
      %p62 = scmp.ne.s32.totalorder %s45, %s61
      %p63 = scmp.eq.s32.totalorder %s23, 0
      %p64 = por %p62, %p63
      %s66 = sadd.s32 %s65, 1
      %p69 = scmp.eq.s32.totalorder %s17, 1
      %p70 = scmp.ne.s32.totalorder %s65, %s67
      %p71 = scmp.eq.s32.totalorder %s17, 0
      %p72 = por %p70, %p71
      %p73 = scmp.ne.s32.totalorder %s65, %s67
      %p74 = scmp.eq.s32.totalorder %s22, 1
      %p75 = por %p73, %p74
      %p76 = scmp.ne.s32.totalorder %s67, %s68
      %p77 = scmp.eq.s32.totalorder %s22, 0
      %p78 = por %p76, %p77
      %p79 = scmp.ne.s32.totalorder %s67, %s68
      %p80 = scmp.eq.s32.totalorder %s23, 1
      %p81 = por %p79, %p80
      %p83 = scmp.ne.s32.totalorder %s68, %s82
      %p84 = scmp.eq.s32.totalorder %s23, 0
      %p85 = por %p83, %p84
      %s87 = sadd.s32 %s86, 1
      %p90 = scmp.eq.s32.totalorder %s17, 1
      %p91 = scmp.ne.s32.totalorder %s86, %s88
      %p92 = scmp.eq.s32.totalorder %s17, 0
      %p93 = por %p91, %p92
      %p94 = scmp.ne.s32.totalorder %s86, %s88
      %p95 = scmp.eq.s32.totalorder %s22, 1
      %p96 = por %p94, %p95
      %p97 = scmp.ne.s32.totalorder %s88, %s89
      %p98 = scmp.eq.s32.totalorder %s22, 0
      %p99 = por %p97, %p98
      %p100 = scmp.ne.s32.totalorder %s88, %s89
      %p101 = scmp.eq.s32.totalorder %s23, 1
      %p102 = por %p100, %p101
      %p104 = scmp.ne.s32.totalorder %s89, %s103
      %p105 = scmp.eq.s32.totalorder %s23, 0
      %p106 = por %p104, %p105
      %s108 = sadd.s32 %s107, 1
      %p111 = scmp.eq.s32.totalorder %s17, 1
      %p112 = scmp.ne.s32.totalorder %s107, %s109
      %p113 = scmp.eq.s32.totalorder %s17, 0
      %p114 = por %p112, %p113
      %p115 = scmp.ne.s32.totalorder %s107, %s109
      %p116 = scmp.eq.s32.totalorder %s22, 1
      %p117 = por %p115, %p116
      %p118 = scmp.ne.s32.totalorder %s109, %s110
      %p119 = scmp.eq.s32.totalorder %s22, 0
      %p120 = por %p118, %p119
      %p121 = scmp.ne.s32.totalorder %s109, %s110
      %p122 = scmp.eq.s32.totalorder %s23, 1
      %p123 = por %p121, %p122
      %p125 = scmp.ne.s32.totalorder %s110, %s124
      %p126 = scmp.eq.s32.totalorder %s23, 0
      %p127 = por %p125, %p126
      %s128 = ssub.s32 %s24, %s36
      %s129 = ssub.s32 %s25, %s32
      %s130 = sor.u32 %s128, %s129
      %p131 = scmp.eq.s32.totalorder %s130, 0
      %s133 = sadd.s32 %s132, 1
      %s134 = scalar_select %p131, %s132, %s133
      %p137 = pneg %p131
      %p138 = scmp.eq.s32.totalorder %s17, 1
      %p139 = por %p137, %p138
      %p140 = scmp.ne.s32.totalorder %s132, %s135
      %p141 = scmp.eq.s32.totalorder %s17, 0
      %p142 = por %p140, %p141
      %p143 = scmp.ne.s32.totalorder %s132, %s135
      %p144 = scmp.eq.s32.totalorder %s22, 1
      %p145 = por %p143, %p144
      %p146 = scmp.ne.s32.totalorder %s135, %s136
      %p147 = scmp.eq.s32.totalorder %s22, 0
      %p148 = por %p146, %p147
      %p149 = scmp.ne.s32.totalorder %s135, %s136
      %p150 = scmp.eq.s32.totalorder %s23, 1
      %p151 = por %p149, %p150
      %p153 = scmp.ne.s32.totalorder %s136, %s152
      %p154 = scmp.eq.s32.totalorder %s23, 0
      %p155 = por %p153, %p154
      %p156 = scmp.le.s32.totalorder 1, %s17
      %p157 = scmp.lt.s32.totalorder %s17, 3
      %p158 = pnand %p156, %p157
      %p159 = pneg %p158
      // Predicated region
      $region9: #{tpu_custom_call.1} parent=5 // pred_check
        _
      $region10: #{tpu_custom_call.1} parent=5 // pred_check_branch
        %161 = sbr.rel (%p158) target = $region12
      $region11: #{tpu_custom_call.1} parent=5 // pred_region
        %s162 = ssub.s32 %s17, 1
        // Predicated region
        $region13: #{tpu_custom_call.1} parent=11 // pred_check
          %p163 = pneg %p78
        $region14: #{tpu_custom_call.1} parent=11 // pred_check_branch
          %165 = sbr.rel (%p163) target = $region16
        $region15: #{tpu_custom_call.1} parent=11 // pred_region
          %s167 = ssub.s32 12672, 12672
          %168 = vsyncadd [#allocation6], %s167
          %s169 = sshll.u32 [#allocation5], 4
          %s170 = int_to_ptr.vmem [resolvable:$true] %s169
          %175 = dma.hbm_to_vmem [thread:$0]  %s1, 12672, %s170, [#allocation6], 384, 384, 24
        $region16: #{tpu_custom_call.1} parent=11 // pred_fallthru
          _
        // Predicated region
        $region17: #{tpu_custom_call.1} parent=11 // pred_check
          %p176 = pneg %p99
        $region18: #{tpu_custom_call.1} parent=11 // pred_check_branch
          %178 = sbr.rel (%p176) target = $region20
        $region19: #{tpu_custom_call.1} parent=11 // pred_region
          _
        $region20: #{tpu_custom_call.1} parent=11 // pred_fallthru
          _
        // Predicated region
        $region21: #{tpu_custom_call.1} parent=11 // pred_check
          %p179 = pneg %p120
        $region22: #{tpu_custom_call.1} parent=11 // pred_check_branch
          %181 = sbr.rel (%p179) target = $region24
        $region23: #{tpu_custom_call.1} parent=11 // pred_region
          _
        $region24: #{tpu_custom_call.1} parent=11 // pred_fallthru
          _
      $region12: #{tpu_custom_call.1} parent=5 // pred_fallthru
        _
      %p182 = scmp.lt.s32.totalorder %s17, 2
      // Predicated region
      $region25: #{tpu_custom_call.1} parent=5 // pred_check
        %p183 = pneg %p182
      $region26: #{tpu_custom_call.1} parent=5 // pred_check_branch
        %185 = sbr.rel (%p183) target = $region28
      $region27: #{tpu_custom_call.1} parent=5 // pred_region
        // Predicated region
        $region29: #{tpu_custom_call.1} parent=27 // pred_check
          %p186 = pneg %p51
        $region30: #{tpu_custom_call.1} parent=27 // pred_check_branch
          %188 = sbr.rel (%p186) target = $region32
        $region31: #{tpu_custom_call.1} parent=27 // pred_region
          %s189 = sand.u32 %s41, 1
          %s190 = scalar_lea.sflag [#allocation3], %s189
          %s191 = sand.u32 %s41, 1
          %s192 = smul.addr %s191, 528
          %s193 = scalar_lea.vmem [#allocation2], %s192
          %s194 = smul.u32 2, %s25
          %s196 = ssub.s32 8448, 8448
          %197 = vsyncadd %s190, %s196
          %s198 = smul.addr %s24, 66
          %s199 = sadd.s32 %s194, %s198
          %s200 = smul.addr %s199, 128
          %s201 = scalar_lea.hbm %s0, %s200
          %s202 = sshll.u32 %s193, 4
          %s203 = int_to_ptr.vmem [resolvable:$true] %s202
          %208 = dma.hbm_to_vmem [thread:$0]  %s201, 8448, %s203, %s190, 256, 256, 16
        $region32: #{tpu_custom_call.1} parent=27 // pred_fallthru
          _
      $region28: #{tpu_custom_call.1} parent=5 // pred_fallthru
        _
      %p209 = scmp.le.s32.totalorder 1, %s17
      %p210 = scmp.lt.s32.totalorder %s17, 3
      %p211 = pnand %p209, %p210
      %p212 = pneg %p211
      // Predicated region
      $region33: #{tpu_custom_call.1} parent=5 // pred_check
        _
      $region34: #{tpu_custom_call.1} parent=5 // pred_check_branch
        %214 = sbr.rel (%p211) target = $region36
      $region35: #{tpu_custom_call.1} parent=5 // pred_region
        %s215 = ssub.s32 %s17, 1
        %s216 = sand.u32 %s44, 1
        %s217 = scalar_lea.sflag [#allocation3], %s216
        %s218 = sand.u32 %s44, 1
        %s219 = smul.addr %s218, 528
        %s220 = scalar_lea.vmem [#allocation2], %s219
        // Predicated region
        $region37: #{tpu_custom_call.1} parent=35 // pred_check
          %p221 = pneg %p57
        $region38: #{tpu_custom_call.1} parent=35 // pred_check_branch
          %223 = sbr.rel (%p221) target = $region40
        $region39: #{tpu_custom_call.1} parent=35 // pred_region
          %224 = dma.done %s217, 8448
        $region40: #{tpu_custom_call.1} parent=35 // pred_fallthru
          _
        // Predicated region
        $region41: #{tpu_custom_call.1} parent=35 // pred_check
          %p225 = pneg %p78
        $region42: #{tpu_custom_call.1} parent=35 // pred_check_branch
          %227 = sbr.rel (%p225) target = $region44
        $region43: #{tpu_custom_call.1} parent=35 // pred_region
          %228 = dma.done [#allocation6], 12672
        $region44: #{tpu_custom_call.1} parent=35 // pred_fallthru
          _
        %s229 = sand.u32 %s44, 1
        %s230 = scalar_lea.sflag [#allocation3], %s229
        %s231 = sand.u32 %s44, 1
        %s232 = smul.addr %s231, 528
        %s233 = scalar_lea.vmem [#allocation2], %s232
        %p234 = pneg %p57
        %p235 = pneg %p54
        %p236 = pneg %p78
        %p237 = pneg %p75
        %p238 = pneg %p99
        %p239 = pneg %p96
        %p240 = pneg %p120
        %p241 = pneg %p117
        %p242 = pneg %p148
        %p243 = pneg %p145
        %s244 = sand.u32 %s135, 1
        %s245 = scalar_lea.sflag [#allocation4], %s244
        %s246 = sand.u32 %s135, 1
        %s247 = smul.addr %s246, 2
        %s248 = scalar_lea.vmem [#allocation7], %s247
        %s249 = smul.u32 2, %s27
        %s250 = smul.u32 2, %s27
        %v251 = vld [vmem:[%s220] sm:$0xff]
        %v252 = vld [vmem:[%s220 + $0x8] sm:$0xff]
        %v253 = vld [vmem:[%s220 + $0x10] sm:$0xff]
        %v254 = vld [vmem:[%s220 + $0x18] sm:$0xff]
        %v255 = vld [vmem:[%s220 + $0x20] sm:$0xff]
        %v256 = vld [vmem:[%s220 + $0x28] sm:$0xff]
        %v257 = vld [vmem:[%s220 + $0x30] sm:$0xff]
        %v258 = vld [vmem:[%s220 + $0x38] sm:$0xff]
        %v259 = vld [vmem:[%s220 + $0x40] sm:$0xff]
        %v260 = vld [vmem:[%s220 + $0x48] sm:$0xff]
        %v261 = vld [vmem:[%s220 + $0x50] sm:$0xff]
        %v262 = vld [vmem:[%s220 + $0x58] sm:$0xff]
        %v263 = vld [vmem:[%s220 + $0x60] sm:$0xff]
        %v264 = vld [vmem:[%s220 + $0x68] sm:$0xff]
        %v265 = vld [vmem:[%s220 + $0x70] sm:$0xff]
        %v266 = vld [vmem:[%s220 + $0x78] sm:$0xff]
        %v267 = vld [vmem:[%s220 + $0x80] sm:$0xff]
        %v268 = vld [vmem:[%s220 + $0x88] sm:$0xff]
        %v269 = vld [vmem:[%s220 + $0x90] sm:$0xff]
        %v270 = vld [vmem:[%s220 + $0x98] sm:$0xff]
        %v271 = vld [vmem:[%s220 + $0xa0] sm:$0xff]
        %v272 = vld [vmem:[%s220 + $0xa8] sm:$0xff]
        %v273 = vld [vmem:[%s220 + $0xb0] sm:$0xff]
        %v274 = vld [vmem:[%s220 + $0xb8] sm:$0xff]
        %v275 = vld [vmem:[%s220 + $0xc0] sm:$0xff]
        %v276 = vld [vmem:[%s220 + $0xc8] sm:$0xff]
        %v277 = vld [vmem:[%s220 + $0xd0] sm:$0xff]
        %v278 = vld [vmem:[%s220 + $0xd8] sm:$0xff]
        %v279 = vld [vmem:[%s220 + $0xe0] sm:$0xff]
        %v280 = vld [vmem:[%s220 + $0xe8] sm:$0xff]
        %v281 = vld [vmem:[%s220 + $0xf0] sm:$0xff]
        %v282 = vld [vmem:[%s220 + $0xf8] sm:$0xff]
        %v283 = vld [vmem:[%s220 + $0x100] sm:$0xff]
        %v284 = vld [vmem:[%s220 + $0x108] sm:$0xff]
        %v285 = vld [vmem:[%s220 + $0x110] sm:$0xff]
        %v286 = vld [vmem:[%s220 + $0x118] sm:$0xff]
        %v287 = vld [vmem:[%s220 + $0x120] sm:$0xff]
        %v288 = vld [vmem:[%s220 + $0x128] sm:$0xff]
        %v289 = vld [vmem:[%s220 + $0x130] sm:$0xff]
        %v290 = vld [vmem:[%s220 + $0x138] sm:$0xff]
        %v291 = vld [vmem:[%s220 + $0x140] sm:$0xff]
        %v292 = vld [vmem:[%s220 + $0x148] sm:$0xff]
        %v293 = vld [vmem:[%s220 + $0x150] sm:$0xff]
        %v294 = vld [vmem:[%s220 + $0x158] sm:$0xff]
        %v295 = vld [vmem:[%s220 + $0x160] sm:$0xff]
        %v296 = vld [vmem:[%s220 + $0x168] sm:$0xff]
        %v297 = vld [vmem:[%s220 + $0x170] sm:$0xff]
        %v298 = vld [vmem:[%s220 + $0x178] sm:$0xff]
        %v299 = vld [vmem:[%s220 + $0x180] sm:$0xff]
        %v300 = vld [vmem:[%s220 + $0x188] sm:$0xff]
        %v301 = vld [vmem:[%s220 + $0x190] sm:$0xff]
        %v302 = vld [vmem:[%s220 + $0x198] sm:$0xff]
        %v303 = vld [vmem:[%s220 + $0x1a0] sm:$0xff]
        %v304 = vld [vmem:[%s220 + $0x1a8] sm:$0xff]
        %v305 = vld [vmem:[%s220 + $0x1b0] sm:$0xff]
        %v306 = vld [vmem:[%s220 + $0x1b8] sm:$0xff]
        %v307 = vld [vmem:[%s220 + $0x1c0] sm:$0xff]
        %v308 = vld [vmem:[%s220 + $0x1c8] sm:$0xff]
        %v309 = vld [vmem:[%s220 + $0x1d0] sm:$0xff]
        %v310 = vld [vmem:[%s220 + $0x1d8] sm:$0xff]
        %v311 = vld [vmem:[%s220 + $0x1e0] sm:$0xff]
        %v312 = vld [vmem:[%s220 + $0x1e8] sm:$0xff]
        %v313 = vld [vmem:[%s220 + $0x1f0] sm:$0xff]
        %v314 = vld [vmem:[%s220 + $0x1f8] sm:$0xff]
        %v315 = vld [vmem:[%s220 + $0x200] sm:$0xff]
        %v316 = vld [vmem:[%s220 + $0x208] sm:$0xff]
        %v317 = vld [vmem:[#allocation5] sm:$0xff]
        %v318 = vld [vmem:[#allocation5 + $0x8] sm:$0xff]
        %v319 = vld [vmem:[#allocation5 + $0x10] sm:$0xff]
        %v320 = vld [vmem:[#allocation5 + $0x18] sm:$0xff]
        %v321 = vld [vmem:[#allocation5 + $0x20] sm:$0xff]
        %v322 = vld [vmem:[#allocation5 + $0x28] sm:$0xff]
        %v323 = vld [vmem:[#allocation5 + $0x30] sm:$0xff]
        %v324 = vld [vmem:[#allocation5 + $0x38] sm:$0xff]
        %v325 = vld [vmem:[#allocation5 + $0x40] sm:$0xff]
        %v326 = vld [vmem:[#allocation5 + $0x48] sm:$0xff]
        %v327 = vld [vmem:[#allocation5 + $0x50] sm:$0xff]
        %v328 = vld [vmem:[#allocation5 + $0x58] sm:$0xff]
        %v329 = vld [vmem:[#allocation5 + $0x60] sm:$0xff]
        %v330 = vld [vmem:[#allocation5 + $0x68] sm:$0xff]
        %v331 = vld [vmem:[#allocation5 + $0x70] sm:$0xff]
        %v332 = vld [vmem:[#allocation5 + $0x78] sm:$0xff]
        %v333 = vld [vmem:[#allocation5 + $0x80] sm:$0xff]
        %v334 = vld [vmem:[#allocation5 + $0x88] sm:$0xff]
        %v335 = vld [vmem:[#allocation5 + $0x90] sm:$0xff]
        %v336 = vld [vmem:[#allocation5 + $0x98] sm:$0xff]
        %v337 = vld [vmem:[#allocation5 + $0xa0] sm:$0xff]
        %v338 = vld [vmem:[#allocation5 + $0xa8] sm:$0xff]
        %v339 = vld [vmem:[#allocation5 + $0xb0] sm:$0xff]
        %v340 = vld [vmem:[#allocation5 + $0xb8] sm:$0xff]
        %v341 = vld [vmem:[#allocation5 + $0xc0] sm:$0xff]
        %v342 = vld [vmem:[#allocation5 + $0xc8] sm:$0xff]
        %v343 = vld [vmem:[#allocation5 + $0xd0] sm:$0xff]
        %v344 = vld [vmem:[#allocation5 + $0xd8] sm:$0xff]
        %v345 = vld [vmem:[#allocation5 + $0xe0] sm:$0xff]
        %v346 = vld [vmem:[#allocation5 + $0xe8] sm:$0xff]
        %v347 = vld [vmem:[#allocation5 + $0xf0] sm:$0xff]
        %v348 = vld [vmem:[#allocation5 + $0xf8] sm:$0xff]
        %v349 = vld [vmem:[#allocation5 + $0x100] sm:$0xff]
        %v350 = vld [vmem:[#allocation5 + $0x108] sm:$0xff]
        %v351 = vld [vmem:[#allocation5 + $0x110] sm:$0xff]
        %v352 = vld [vmem:[#allocation5 + $0x118] sm:$0xff]
        %v353 = vld [vmem:[#allocation5 + $0x120] sm:$0xff]
        %v354 = vld [vmem:[#allocation5 + $0x128] sm:$0xff]
        %v355 = vld [vmem:[#allocation5 + $0x130] sm:$0xff]
        %v356 = vld [vmem:[#allocation5 + $0x138] sm:$0xff]
        %v357 = vld [vmem:[#allocation5 + $0x140] sm:$0xff]
        %v358 = vld [vmem:[#allocation5 + $0x148] sm:$0xff]
        %v359 = vld [vmem:[#allocation5 + $0x150] sm:$0xff]
        %v360 = vld [vmem:[#allocation5 + $0x158] sm:$0xff]
        %v361 = vld [vmem:[#allocation5 + $0x160] sm:$0xff]
        %v362 = vld [vmem:[#allocation5 + $0x168] sm:$0xff]
        %v363 = vld [vmem:[#allocation5 + $0x170] sm:$0xff]
        %v364 = vld [vmem:[#allocation5 + $0x178] sm:$0xff]
        %v365 = vld [vmem:[#allocation5 + $0x180] sm:$0xff]
        %v366 = vld [vmem:[#allocation5 + $0x188] sm:$0xff]
        %v367 = vld [vmem:[#allocation5 + $0x190] sm:$0xff]
        %v368 = vld [vmem:[#allocation5 + $0x198] sm:$0xff]
        %v369 = vld [vmem:[#allocation5 + $0x1a0] sm:$0xff]
        %v370 = vld [vmem:[#allocation5 + $0x1a8] sm:$0xff]
        %v371 = vld [vmem:[#allocation5 + $0x1b0] sm:$0xff]
        %v372 = vld [vmem:[#allocation5 + $0x1b8] sm:$0xff]
        %v373 = vld [vmem:[#allocation5 + $0x1c0] sm:$0xff]
        %v374 = vld [vmem:[#allocation5 + $0x1c8] sm:$0xff]
        %v375 = vld [vmem:[#allocation5 + $0x1d0] sm:$0xff]
        %v376 = vld [vmem:[#allocation5 + $0x1d8] sm:$0xff]
        %v377 = vld [vmem:[#allocation5 + $0x1e0] sm:$0xff]
        %v378 = vld [vmem:[#allocation5 + $0x1e8] sm:$0xff]
        %v379 = vld [vmem:[#allocation5 + $0x1f0] sm:$0xff]
        %v380 = vld [vmem:[#allocation5 + $0x1f8] sm:$0xff]
        %v381 = vld [vmem:[#allocation5 + $0x200] sm:$0xff]
        %v382 = vld [vmem:[#allocation5 + $0x208] sm:$0xff]
        %v383 = vld [vmem:[#allocation5 + $0x210] sm:$0xff]
        %v384 = vld [vmem:[#allocation5 + $0x218] sm:$0xff]
        %v385 = vld [vmem:[#allocation5 + $0x220] sm:$0xff]
        %v386 = vld [vmem:[#allocation5 + $0x228] sm:$0xff]
        %v387 = vld [vmem:[#allocation5 + $0x230] sm:$0xff]
        %v388 = vld [vmem:[#allocation5 + $0x238] sm:$0xff]
        %v389 = vld [vmem:[#allocation5 + $0x240] sm:$0xff]
        %v390 = vld [vmem:[#allocation5 + $0x248] sm:$0xff]
        %v391 = vld [vmem:[#allocation5 + $0x250] sm:$0xff]
        %v392 = vld [vmem:[#allocation5 + $0x258] sm:$0xff]
        %v393 = vld [vmem:[#allocation5 + $0x260] sm:$0xff]
        %v394 = vld [vmem:[#allocation5 + $0x268] sm:$0xff]
        %v395 = vld [vmem:[#allocation5 + $0x270] sm:$0xff]
        %v396 = vld [vmem:[#allocation5 + $0x278] sm:$0xff]
        %v397 = vld [vmem:[#allocation5 + $0x280] sm:$0xff]
        %v398 = vld [vmem:[#allocation5 + $0x288] sm:$0xff]
        %v399 = vld [vmem:[#allocation5 + $0x290] sm:$0xff]
        %v400 = vld [vmem:[#allocation5 + $0x298] sm:$0xff]
        %v401 = vld [vmem:[#allocation5 + $0x2a0] sm:$0xff]
        %v402 = vld [vmem:[#allocation5 + $0x2a8] sm:$0xff]
        %v403 = vld [vmem:[#allocation5 + $0x2b0] sm:$0xff]
        %v404 = vld [vmem:[#allocation5 + $0x2b8] sm:$0xff]
        %v405 = vld [vmem:[#allocation5 + $0x2c0] sm:$0xff]
        %v406 = vld [vmem:[#allocation5 + $0x2c8] sm:$0xff]
        %v407 = vld [vmem:[#allocation5 + $0x2d0] sm:$0xff]
        %v408 = vld [vmem:[#allocation5 + $0x2d8] sm:$0xff]
        %v409 = vld [vmem:[#allocation5 + $0x2e0] sm:$0xff]
        %v410 = vld [vmem:[#allocation5 + $0x2e8] sm:$0xff]
        %v411 = vld [vmem:[#allocation5 + $0x2f0] sm:$0xff]
        %v412 = vld [vmem:[#allocation5 + $0x2f8] sm:$0xff]
        %v413 = vld [vmem:[#allocation5 + $0x300] sm:$0xff]
        %v414 = vld [vmem:[#allocation5 + $0x308] sm:$0xff]
        %v415 = vld [vmem:[#allocation5 + $0x310] sm:$0xff]
        %vm416 = vcmask 64512
        %v418 = vsel %vm416, %v319, 0
        %v421 = vsel %vm416, %v322, 0
        %v424 = vsel %vm416, %v325, 0
        %v427 = vsel %vm416, %v328, 0
        %v430 = vsel %vm416, %v331, 0
        %v433 = vsel %vm416, %v334, 0
        %v436 = vsel %vm416, %v337, 0
        %v439 = vsel %vm416, %v340, 0
        %v442 = vsel %vm416, %v343, 0
        %v445 = vsel %vm416, %v346, 0
        %v448 = vsel %vm416, %v349, 0
        %v451 = vsel %vm416, %v352, 0
        %v454 = vsel %vm416, %v355, 0
        %v457 = vsel %vm416, %v358, 0
        %v460 = vsel %vm416, %v361, 0
        %v463 = vsel %vm416, %v364, 0
        %v466 = vsel %vm416, %v367, 0
        %v469 = vsel %vm416, %v370, 0
        %v472 = vsel %vm416, %v373, 0
        %v475 = vsel %vm416, %v376, 0
        %v478 = vsel %vm416, %v379, 0
        %v481 = vsel %vm416, %v382, 0
        %v484 = vsel %vm416, %v385, 0
        %v487 = vsel %vm416, %v388, 0
        %v490 = vsel %vm416, %v391, 0
        %v493 = vsel %vm416, %v394, 0
        %v496 = vsel %vm416, %v397, 0
        %v499 = vsel %vm416, %v400, 0
        %v502 = vsel %vm416, %v403, 0
        %v505 = vsel %vm416, %v406, 0
        %v508 = vsel %vm416, %v409, 0
        %v511 = vsel %vm416, %v412, 0
        %v514 = vsel %vm416, %v415, 0
        %516 = vmatprep.subr.mxu0 %v252
        %517 = vmatpush1.msra.mxu0 %v251
        %518 = vmatprep.subr.mxu0 %v254
        %519 = vmatpush1.msra.mxu0 %v253
        %520 = vmatprep.subr.mxu0 %v256
        %521 = vmatpush1.msra.mxu0 %v255
        %522 = vmatprep.subr.mxu0 %v258
        %523 = vmatpush1.msra.mxu0 %v257
        %524 = vmatprep.subr.mxu0 %v260
        %525 = vmatpush1.msra.mxu0 %v259
        %526 = vmatprep.subr.mxu0 %v262
        %527 = vmatpush1.msra.mxu0 %v261
        %528 = vmatprep.subr.mxu0 %v264
        %529 = vmatpush1.msra.mxu0 %v263
        %530 = vmatprep.subr.mxu0 %v266
        %531 = vmatpush1.msra.mxu0 %v265
        %532 = vmatprep.subr.mxu0 %v268
        %533 = vmatpush1.msra.mxu0 %v267
        %534 = vmatprep.subr.mxu0 %v270
        %535 = vmatpush1.msra.mxu0 %v269
        %536 = vmatprep.subr.mxu0 %v272
        %537 = vmatpush1.msra.mxu0 %v271
        %538 = vmatprep.subr.mxu0 %v274
        %539 = vmatpush1.msra.mxu0 %v273
        %540 = vmatprep.subr.mxu0 %v276
        %541 = vmatpush1.msra.mxu0 %v275
        %542 = vmatprep.subr.mxu0 %v278
        %543 = vmatpush1.msra.mxu0 %v277
        %544 = vmatprep.subr.mxu0 %v280
        %545 = vmatpush1.msra.mxu0 %v279
        %546 = vmatprep.subr.mxu0 %v282
        %547 = vmatpush1.msra.mxu0 %v281
        %548 = vmatprep.subr.mxu0 %v284
        %549 = vmatpush1.msra.mxu0 %v283
        %550 = vmatprep.subr.mxu0 %v286
        %551 = vmatpush1.msra.mxu0 %v285
        %552 = vmatprep.subr.mxu0 %v288
        %553 = vmatpush1.msra.mxu0 %v287
        %554 = vmatprep.subr.mxu0 %v290
        %555 = vmatpush1.msra.mxu0 %v289
        %556 = vmatprep.subr.mxu0 %v292
        %557 = vmatpush1.msra.mxu0 %v291
        %558 = vmatprep.subr.mxu0 %v294
        %559 = vmatpush1.msra.mxu0 %v293
        %560 = vmatprep.subr.mxu0 %v296
        %561 = vmatpush1.msra.mxu0 %v295
        %562 = vmatprep.subr.mxu0 %v298
        %563 = vmatpush1.msra.mxu0 %v297
        %564 = vmatprep.subr.mxu0 %v300
        %565 = vmatpush1.msra.mxu0 %v299
        %566 = vmatprep.subr.mxu0 %v302
        %567 = vmatpush1.msra.mxu0 %v301
        %568 = vmatprep.subr.mxu0 %v304
        %569 = vmatpush1.msra.mxu0 %v303
        %570 = vmatprep.subr.mxu0 %v306
        %571 = vmatpush1.msra.mxu0 %v305
        %572 = vmatprep.subr.mxu0 %v308
        %573 = vmatpush1.msra.mxu0 %v307
        %574 = vmatprep.subr.mxu0 %v310
        %575 = vmatpush1.msra.mxu0 %v309
        %576 = vmatprep.subr.mxu0 %v312
        %577 = vmatpush1.msra.mxu0 %v311
        %578 = vmatprep.subr.mxu0 %v314
        %579 = vmatpush1.msra.mxu0 %v313
        %580 = vmatprep.mubr.f32.mxu0 %v318
        %581 = vmatmul.mubr.f32.gmra.mrb[0].mxu0 %v317
        %v582 = vpop.f32.mrb[0].mxu0
        %v583 = vadd.f32 0.0, %v582
        %v584 = vpop.f32.mrb[0].mxu0
        %v585 = vadd.f32 0.0, %v584
        %586 = vmatprep.mubr.f32.mxu0 %v321
        %587 = vmatmul.mubr.f32.gmra.mrb[0].mxu0 %v320
        %v588 = vpop.f32.mrb[0].mxu0
        %v589 = vadd.f32 0.0, %v588
        %v590 = vpop.f32.mrb[0].mxu0
        %v591 = vadd.f32 0.0, %v590
        %592 = vmatprep.mubr.f32.mxu0 %v324
        %593 = vmatmul.mubr.f32.gmra.mrb[0].mxu0 %v323
        %v594 = vpop.f32.mrb[0].mxu0
        %v595 = vadd.f32 0.0, %v594
        %v596 = vpop.f32.mrb[0].mxu0
        %v597 = vadd.f32 0.0, %v596
        %598 = vmatprep.mubr.f32.mxu0 %v327
        %599 = vmatmul.mubr.f32.gmra.mrb[0].mxu0 %v326
        %v600 = vpop.f32.mrb[0].mxu0
        %v601 = vadd.f32 0.0, %v600
        %v602 = vpop.f32.mrb[0].mxu0
        %v603 = vadd.f32 0.0, %v602
        %604 = vmatprep.mubr.f32.mxu0 %v330
        %605 = vmatmul.mubr.f32.gmra.mrb[0].mxu0 %v329
        %v606 = vpop.f32.mrb[0].mxu0
        %v607 = vadd.f32 0.0, %v606
        %v608 = vpop.f32.mrb[0].mxu0
        %v609 = vadd.f32 0.0, %v608
        %610 = vmatprep.mubr.f32.mxu0 %v333
        %611 = vmatmul.mubr.f32.gmra.mrb[0].mxu0 %v332
        %v612 = vpop.f32.mrb[0].mxu0
        %v613 = vadd.f32 0.0, %v612
        %v614 = vpop.f32.mrb[0].mxu0
        %v615 = vadd.f32 0.0, %v614
        %616 = vmatprep.mubr.f32.mxu0 %v336
        %617 = vmatmul.mubr.f32.gmra.mrb[0].mxu0 %v335
        %v618 = vpop.f32.mrb[0].mxu0
        %v619 = vadd.f32 0.0, %v618
        %v620 = vpop.f32.mrb[0].mxu0
        %v621 = vadd.f32 0.0, %v620
        %622 = vmatprep.mubr.f32.mxu0 %v339
        %623 = vmatmul.mubr.f32.gmra.mrb[0].mxu0 %v338
        %v624 = vpop.f32.mrb[0].mxu0
        %v625 = vadd.f32 0.0, %v624
        %v626 = vpop.f32.mrb[0].mxu0
        %v627 = vadd.f32 0.0, %v626
        %628 = vmatprep.mubr.f32.mxu0 %v342
        %629 = vmatmul.mubr.f32.gmra.mrb[0].mxu0 %v341
        %v630 = vpop.f32.mrb[0].mxu0
        %v631 = vadd.f32 0.0, %v630
        %v632 = vpop.f32.mrb[0].mxu0
        %v633 = vadd.f32 0.0, %v632
        %634 = vmatprep.mubr.f32.mxu0 %v345
        %635 = vmatmul.mubr.f32.gmra.mrb[0].mxu0 %v344
        %v636 = vpop.f32.mrb[0].mxu0
        %v637 = vadd.f32 0.0, %v636
        %v638 = vpop.f32.mrb[0].mxu0
        %v639 = vadd.f32 0.0, %v638
        %640 = vmatprep.mubr.f32.mxu0 %v348
        %641 = vmatmul.mubr.f32.gmra.mrb[0].mxu0 %v347
        %v642 = vpop.f32.mrb[0].mxu0
        %v643 = vadd.f32 0.0, %v642
        %v644 = vpop.f32.mrb[0].mxu0
        %v645 = vadd.f32 0.0, %v644
        %646 = vmatprep.mubr.f32.mxu0 %v351
        %647 = vmatmul.mubr.f32.gmra.mrb[0].mxu0 %v350
        %v648 = vpop.f32.mrb[0].mxu0
        %v649 = vadd.f32 0.0, %v648
        %v650 = vpop.f32.mrb[0].mxu0
        %v651 = vadd.f32 0.0, %v650
        %652 = vmatprep.mubr.f32.mxu0 %v354
        %653 = vmatmul.mubr.f32.gmra.mrb[0].mxu0 %v353
        %v654 = vpop.f32.mrb[0].mxu0
        %v655 = vadd.f32 0.0, %v654
        %v656 = vpop.f32.mrb[0].mxu0
        %v657 = vadd.f32 0.0, %v656
        %658 = vmatprep.mubr.f32.mxu0 %v357
        %659 = vmatmul.mubr.f32.gmra.mrb[0].mxu0 %v356
        %v660 = vpop.f32.mrb[0].mxu0
        %v661 = vadd.f32 0.0, %v660
        %v662 = vpop.f32.mrb[0].mxu0
        %v663 = vadd.f32 0.0, %v662
        %664 = vmatprep.mubr.f32.mxu0 %v360
        %665 = vmatmul.mubr.f32.gmra.mrb[0].mxu0 %v359
        %v666 = vpop.f32.mrb[0].mxu0
        %v667 = vadd.f32 0.0, %v666
        %v668 = vpop.f32.mrb[0].mxu0
        %v669 = vadd.f32 0.0, %v668
        %670 = vmatprep.mubr.f32.mxu0 %v363
        %671 = vmatmul.mubr.f32.gmra.mrb[0].mxu0 %v362
        %v672 = vpop.f32.mrb[0].mxu0
        %v673 = vadd.f32 0.0, %v672
        %v674 = vpop.f32.mrb[0].mxu0
        %v675 = vadd.f32 0.0, %v674
        %676 = vmatprep.mubr.f32.mxu0 %v366
        %677 = vmatmul.mubr.f32.gmra.mrb[0].mxu0 %v365
        %v678 = vpop.f32.mrb[0].mxu0
        %v679 = vadd.f32 0.0, %v678
        %v680 = vpop.f32.mrb[0].mxu0
        %v681 = vadd.f32 0.0, %v680
        %682 = vmatprep.mubr.f32.mxu0 %v369
        %683 = vmatmul.mubr.f32.gmra.mrb[0].mxu0 %v368
        %v684 = vpop.f32.mrb[0].mxu0
        %v685 = vadd.f32 0.0, %v684
        %v686 = vpop.f32.mrb[0].mxu0
        %v687 = vadd.f32 0.0, %v686
        %688 = vmatprep.mubr.f32.mxu0 %v372
        %689 = vmatmul.mubr.f32.gmra.mrb[0].mxu0 %v371
        %v690 = vpop.f32.mrb[0].mxu0
        %v691 = vadd.f32 0.0, %v690
        %v692 = vpop.f32.mrb[0].mxu0
        %v693 = vadd.f32 0.0, %v692
        %694 = vmatprep.mubr.f32.mxu0 %v375
        %695 = vmatmul.mubr.f32.gmra.mrb[0].mxu0 %v374
        %v696 = vpop.f32.mrb[0].mxu0
        %v697 = vadd.f32 0.0, %v696
        %v698 = vpop.f32.mrb[0].mxu0
        %v699 = vadd.f32 0.0, %v698
        %700 = vmatprep.mubr.f32.mxu0 %v378
        %701 = vmatmul.mubr.f32.gmra.mrb[0].mxu0 %v377
        %v702 = vpop.f32.mrb[0].mxu0
        %v703 = vadd.f32 0.0, %v702
        %v704 = vpop.f32.mrb[0].mxu0
        %v705 = vadd.f32 0.0, %v704
        %706 = vmatprep.mubr.f32.mxu0 %v381
        %707 = vmatmul.mubr.f32.gmra.mrb[0].mxu0 %v380
        %v708 = vpop.f32.mrb[0].mxu0
        %v709 = vadd.f32 0.0, %v708
        %v710 = vpop.f32.mrb[0].mxu0
        %v711 = vadd.f32 0.0, %v710
        %712 = vmatprep.mubr.f32.mxu0 %v384
        %713 = vmatmul.mubr.f32.gmra.mrb[0].mxu0 %v383
        %v714 = vpop.f32.mrb[0].mxu0
        %v715 = vadd.f32 0.0, %v714
        %v716 = vpop.f32.mrb[0].mxu0
        %v717 = vadd.f32 0.0, %v716
        %718 = vmatprep.mubr.f32.mxu0 %v387
        %719 = vmatmul.mubr.f32.gmra.mrb[0].mxu0 %v386
        %v720 = vpop.f32.mrb[0].mxu0
        %v721 = vadd.f32 0.0, %v720
        %v722 = vpop.f32.mrb[0].mxu0
        %v723 = vadd.f32 0.0, %v722
        %724 = vmatprep.mubr.f32.mxu0 %v390
        %725 = vmatmul.mubr.f32.gmra.mrb[0].mxu0 %v389
        %v726 = vpop.f32.mrb[0].mxu0
        %v727 = vadd.f32 0.0, %v726
        %v728 = vpop.f32.mrb[0].mxu0
        %v729 = vadd.f32 0.0, %v728
        %730 = vmatprep.mubr.f32.mxu0 %v393
        %731 = vmatmul.mubr.f32.gmra.mrb[0].mxu0 %v392
        %v732 = vpop.f32.mrb[0].mxu0
        %v733 = vadd.f32 0.0, %v732
        %v734 = vpop.f32.mrb[0].mxu0
        %v735 = vadd.f32 0.0, %v734
        %736 = vmatprep.mubr.f32.mxu0 %v396
        %737 = vmatmul.mubr.f32.gmra.mrb[0].mxu0 %v395
        %v738 = vpop.f32.mrb[0].mxu0
        %v739 = vadd.f32 0.0, %v738
        %v740 = vpop.f32.mrb[0].mxu0
        %v741 = vadd.f32 0.0, %v740
        %742 = vmatprep.mubr.f32.mxu0 %v399
        %743 = vmatmul.mubr.f32.gmra.mrb[0].mxu0 %v398
        %v744 = vpop.f32.mrb[0].mxu0
        %v745 = vadd.f32 0.0, %v744
        %v746 = vpop.f32.mrb[0].mxu0
        %v747 = vadd.f32 0.0, %v746
        %748 = vmatprep.mubr.f32.mxu0 %v402
        %749 = vmatmul.mubr.f32.gmra.mrb[0].mxu0 %v401
        %v750 = vpop.f32.mrb[0].mxu0
        %v751 = vadd.f32 0.0, %v750
        %v752 = vpop.f32.mrb[0].mxu0
        %v753 = vadd.f32 0.0, %v752
        %754 = vmatprep.mubr.f32.mxu0 %v405
        %755 = vmatmul.mubr.f32.gmra.mrb[0].mxu0 %v404
        %v756 = vpop.f32.mrb[0].mxu0
        %v757 = vadd.f32 0.0, %v756
        %v758 = vpop.f32.mrb[0].mxu0
        %v759 = vadd.f32 0.0, %v758
        %760 = vmatprep.mubr.f32.mxu0 %v408
        %761 = vmatmul.mubr.f32.gmra.mrb[0].mxu0 %v407
        %v762 = vpop.f32.mrb[0].mxu0
        %v763 = vadd.f32 0.0, %v762
        %v764 = vpop.f32.mrb[0].mxu0
        %v765 = vadd.f32 0.0, %v764
        %766 = vmatprep.mubr.f32.mxu0 %v411
        %767 = vmatmul.mubr.f32.gmra.mrb[0].mxu0 %v410
        %v768 = vpop.f32.mrb[0].mxu0
        %v769 = vadd.f32 0.0, %v768
        %v770 = vpop.f32.mrb[0].mxu0
        %v771 = vadd.f32 0.0, %v770
        %772 = vmatprep.mubr.f32.mxu0 %v414
        %773 = vmatmul.mubr.f32.gmra.mrb[0].mxu0 %v413
        %v774 = vpop.f32.mrb[0].mxu0
        %v775 = vadd.f32 0.0, %v774
        %v776 = vpop.f32.mrb[0].mxu0
        %v777 = vadd.f32 0.0, %v776
        %778 = vdwg.mxu0
        %779 = vmatprep.subr.mxu0 %v316
        %780 = vmatpush1.msra.mxu0 %v315
        %781 = vmatprep.subr.mxu0 0.0
        %782 = vmatpush1.msra.mxu0 0.0
        %783 = vmatprep.subr.mxu0 0.0
        %784 = vmatpush1.msra.mxu0 0.0
        %785 = vmatprep.subr.mxu0 0.0
        %786 = vmatpush1.msra.mxu0 0.0
        %787 = vmatprep.subr.mxu0 0.0
        %788 = vmatpush1.msra.mxu0 0.0
        %789 = vmatprep.subr.mxu0 0.0
        %790 = vmatpush1.msra.mxu0 0.0
        %791 = vmatprep.subr.mxu0 0.0
        %792 = vmatpush1.msra.mxu0 0.0
        %793 = vmatprep.subr.mxu0 0.0
        %794 = vmatpush1.msra.mxu0 0.0
        %795 = vmatprep.subr.mxu0 0.0
        %796 = vmatpush1.msra.mxu0 0.0
        %797 = vmatprep.subr.mxu0 0.0
        %798 = vmatpush1.msra.mxu0 0.0
        %799 = vmatprep.subr.mxu0 0.0
        %800 = vmatpush1.msra.mxu0 0.0
        %801 = vmatprep.subr.mxu0 0.0
        %802 = vmatpush1.msra.mxu0 0.0
        %803 = vmatprep.subr.mxu0 0.0
        %804 = vmatpush1.msra.mxu0 0.0
        %805 = vmatprep.subr.mxu0 0.0
        %806 = vmatpush1.msra.mxu0 0.0
        %807 = vmatprep.subr.mxu0 0.0
        %808 = vmatpush1.msra.mxu0 0.0
        %809 = vmatprep.subr.mxu0 0.0
        %810 = vmatpush1.msra.mxu0 0.0
        %811 = vmatprep.subr.mxu0 0.0
        %812 = vmatpush1.msra.mxu0 0.0
        %813 = vmatprep.subr.mxu0 0.0
        %814 = vmatpush1.msra.mxu0 0.0
        %815 = vmatprep.subr.mxu0 0.0
        %816 = vmatpush1.msra.mxu0 0.0
        %817 = vmatprep.subr.mxu0 0.0
        %818 = vmatpush1.msra.mxu0 0.0
        %819 = vmatprep.subr.mxu0 0.0
        %820 = vmatpush1.msra.mxu0 0.0
        %821 = vmatprep.subr.mxu0 0.0
        %822 = vmatpush1.msra.mxu0 0.0
        %823 = vmatprep.subr.mxu0 0.0
        %824 = vmatpush1.msra.mxu0 0.0
        %825 = vmatprep.subr.mxu0 0.0
        %826 = vmatpush1.msra.mxu0 0.0
        %827 = vmatprep.subr.mxu0 0.0
        %828 = vmatpush1.msra.mxu0 0.0
        %829 = vmatprep.subr.mxu0 0.0
        %830 = vmatpush1.msra.mxu0 0.0
        %831 = vmatprep.subr.mxu0 0.0
        %832 = vmatpush1.msra.mxu0 0.0
        %833 = vmatprep.subr.mxu0 0.0
        %834 = vmatpush1.msra.mxu0 0.0
        %835 = vmatprep.subr.mxu0 0.0
        %836 = vmatpush1.msra.mxu0 0.0
        %837 = vmatprep.subr.mxu0 0.0
        %838 = vmatpush1.msra.mxu0 0.0
        %839 = vmatprep.subr.mxu0 0.0
        %840 = vmatpush1.msra.mxu0 0.0
        %841 = vmatprep.subr.mxu0 0.0
        %842 = vmatpush1.msra.mxu0 0.0
        %843 = vmatprep.mubr.f32.mxu0 0.0
        %844 = vmatmul.mubr.f32.gmra.mrb[0].mxu0 %v418
        %v845 = vpop.f32.mrb[0].mxu0
        %v846 = vadd.f32 %v583, %v845
        %v847 = vpop.f32.mrb[0].mxu0
        %v848 = vadd.f32 %v585, %v847
        %849 = vmatprep.mubr.f32.mxu0 0.0
        %850 = vmatmul.mubr.f32.gmra.mrb[0].mxu0 %v421
        %v851 = vpop.f32.mrb[0].mxu0
        %v852 = vadd.f32 %v589, %v851
        %v853 = vpop.f32.mrb[0].mxu0
        %v854 = vadd.f32 %v591, %v853
        %855 = vmatprep.mubr.f32.mxu0 0.0
        %856 = vmatmul.mubr.f32.gmra.mrb[0].mxu0 %v424
        %v857 = vpop.f32.mrb[0].mxu0
        %v858 = vadd.f32 %v595, %v857
        %v859 = vpop.f32.mrb[0].mxu0
        %v860 = vadd.f32 %v597, %v859
        %861 = vmatprep.mubr.f32.mxu0 0.0
        %862 = vmatmul.mubr.f32.gmra.mrb[0].mxu0 %v427
        %v863 = vpop.f32.mrb[0].mxu0
        %v864 = vadd.f32 %v601, %v863
        %v865 = vpop.f32.mrb[0].mxu0
        %v866 = vadd.f32 %v603, %v865
        %867 = vmatprep.mubr.f32.mxu0 0.0
        %868 = vmatmul.mubr.f32.gmra.mrb[0].mxu0 %v430
        %v869 = vpop.f32.mrb[0].mxu0
        %v870 = vadd.f32 %v607, %v869
        %v871 = vpop.f32.mrb[0].mxu0
        %v872 = vadd.f32 %v609, %v871
        %873 = vmatprep.mubr.f32.mxu0 0.0
        %874 = vmatmul.mubr.f32.gmra.mrb[0].mxu0 %v433
        %v875 = vpop.f32.mrb[0].mxu0
        %v876 = vadd.f32 %v613, %v875
        %v877 = vpop.f32.mrb[0].mxu0
        %v878 = vadd.f32 %v615, %v877
        %879 = vmatprep.mubr.f32.mxu0 0.0
        %880 = vmatmul.mubr.f32.gmra.mrb[0].mxu0 %v436
        %v881 = vpop.f32.mrb[0].mxu0
        %v882 = vadd.f32 %v619, %v881
        %v883 = vpop.f32.mrb[0].mxu0
        %v884 = vadd.f32 %v621, %v883
        %885 = vmatprep.mubr.f32.mxu0 0.0
        %886 = vmatmul.mubr.f32.gmra.mrb[0].mxu0 %v439
        %v887 = vpop.f32.mrb[0].mxu0
        %v888 = vadd.f32 %v625, %v887
        %v889 = vpop.f32.mrb[0].mxu0
        %v890 = vadd.f32 %v627, %v889
        %891 = vmatprep.mubr.f32.mxu0 0.0
        %892 = vmatmul.mubr.f32.gmra.mrb[0].mxu0 %v442
        %v893 = vpop.f32.mrb[0].mxu0
        %v894 = vadd.f32 %v631, %v893
        %v895 = vpop.f32.mrb[0].mxu0
        %v896 = vadd.f32 %v633, %v895
        %897 = vmatprep.mubr.f32.mxu0 0.0
        %898 = vmatmul.mubr.f32.gmra.mrb[0].mxu0 %v445
        %v899 = vpop.f32.mrb[0].mxu0
        %v900 = vadd.f32 %v637, %v899
        %v901 = vpop.f32.mrb[0].mxu0
        %v902 = vadd.f32 %v639, %v901
        %903 = vmatprep.mubr.f32.mxu0 0.0
        %904 = vmatmul.mubr.f32.gmra.mrb[0].mxu0 %v448
        %v905 = vpop.f32.mrb[0].mxu0
        %v906 = vadd.f32 %v643, %v905
        %v907 = vpop.f32.mrb[0].mxu0
        %v908 = vadd.f32 %v645, %v907
        %909 = vmatprep.mubr.f32.mxu0 0.0
        %910 = vmatmul.mubr.f32.gmra.mrb[0].mxu0 %v451
        %v911 = vpop.f32.mrb[0].mxu0
        %v912 = vadd.f32 %v649, %v911
        %v913 = vpop.f32.mrb[0].mxu0
        %v914 = vadd.f32 %v651, %v913
        %915 = vmatprep.mubr.f32.mxu0 0.0
        %916 = vmatmul.mubr.f32.gmra.mrb[0].mxu0 %v454
        %v917 = vpop.f32.mrb[0].mxu0
        %v918 = vadd.f32 %v655, %v917
        %v919 = vpop.f32.mrb[0].mxu0
        %v920 = vadd.f32 %v657, %v919
        %921 = vmatprep.mubr.f32.mxu0 0.0
        %922 = vmatmul.mubr.f32.gmra.mrb[0].mxu0 %v457
        %v923 = vpop.f32.mrb[0].mxu0
        %v924 = vadd.f32 %v661, %v923
        %v925 = vpop.f32.mrb[0].mxu0
        %v926 = vadd.f32 %v663, %v925
        %927 = vmatprep.mubr.f32.mxu0 0.0
        %928 = vmatmul.mubr.f32.gmra.mrb[0].mxu0 %v460
        %v929 = vpop.f32.mrb[0].mxu0
        %v930 = vadd.f32 %v667, %v929
        %v931 = vpop.f32.mrb[0].mxu0
        %v932 = vadd.f32 %v669, %v931
        %933 = vmatprep.mubr.f32.mxu0 0.0
        %934 = vmatmul.mubr.f32.gmra.mrb[0].mxu0 %v463
        %v935 = vpop.f32.mrb[0].mxu0
        %v936 = vadd.f32 %v673, %v935
        %v937 = vpop.f32.mrb[0].mxu0
        %v938 = vadd.f32 %v675, %v937
        %939 = vmatprep.mubr.f32.mxu0 0.0
        %940 = vmatmul.mubr.f32.gmra.mrb[0].mxu0 %v466
        %v941 = vpop.f32.mrb[0].mxu0
        %v942 = vadd.f32 %v679, %v941
        %v943 = vpop.f32.mrb[0].mxu0
        %v944 = vadd.f32 %v681, %v943
        %945 = vmatprep.mubr.f32.mxu0 0.0
        %946 = vmatmul.mubr.f32.gmra.mrb[0].mxu0 %v469
        %v947 = vpop.f32.mrb[0].mxu0
        %v948 = vadd.f32 %v685, %v947
        %v949 = vpop.f32.mrb[0].mxu0
        %v950 = vadd.f32 %v687, %v949
        %951 = vmatprep.mubr.f32.mxu0 0.0
        %952 = vmatmul.mubr.f32.gmra.mrb[0].mxu0 %v472
        %v953 = vpop.f32.mrb[0].mxu0
        %v954 = vadd.f32 %v691, %v953
        %v955 = vpop.f32.mrb[0].mxu0
        %v956 = vadd.f32 %v693, %v955
        %957 = vmatprep.mubr.f32.mxu0 0.0
        %958 = vmatmul.mubr.f32.gmra.mrb[0].mxu0 %v475
        %v959 = vpop.f32.mrb[0].mxu0
        %v960 = vadd.f32 %v697, %v959
        %v961 = vpop.f32.mrb[0].mxu0
        %v962 = vadd.f32 %v699, %v961
        %963 = vmatprep.mubr.f32.mxu0 0.0
        %964 = vmatmul.mubr.f32.gmra.mrb[0].mxu0 %v478
        %v965 = vpop.f32.mrb[0].mxu0
        %v966 = vadd.f32 %v703, %v965
        %v967 = vpop.f32.mrb[0].mxu0
        %v968 = vadd.f32 %v705, %v967
        %969 = vmatprep.mubr.f32.mxu0 0.0
        %970 = vmatmul.mubr.f32.gmra.mrb[0].mxu0 %v481
        %v971 = vpop.f32.mrb[0].mxu0
        %v972 = vadd.f32 %v709, %v971
        %v973 = vpop.f32.mrb[0].mxu0
        %v974 = vadd.f32 %v711, %v973
        %975 = vmatprep.mubr.f32.mxu0 0.0
        %976 = vmatmul.mubr.f32.gmra.mrb[0].mxu0 %v484
        %v977 = vpop.f32.mrb[0].mxu0
        %v978 = vadd.f32 %v715, %v977
        %v979 = vpop.f32.mrb[0].mxu0
        %v980 = vadd.f32 %v717, %v979
        %981 = vmatprep.mubr.f32.mxu0 0.0
        %982 = vmatmul.mubr.f32.gmra.mrb[0].mxu0 %v487
        %v983 = vpop.f32.mrb[0].mxu0
        %v984 = vadd.f32 %v721, %v983
        %v985 = vpop.f32.mrb[0].mxu0
        %v986 = vadd.f32 %v723, %v985
        %987 = vmatprep.mubr.f32.mxu0 0.0
        %988 = vmatmul.mubr.f32.gmra.mrb[0].mxu0 %v490
        %v989 = vpop.f32.mrb[0].mxu0
        %v990 = vadd.f32 %v727, %v989
        %v991 = vpop.f32.mrb[0].mxu0
        %v992 = vadd.f32 %v729, %v991
        %993 = vmatprep.mubr.f32.mxu0 0.0
        %994 = vmatmul.mubr.f32.gmra.mrb[0].mxu0 %v493
        %v995 = vpop.f32.mrb[0].mxu0
        %v996 = vadd.f32 %v733, %v995
        %v997 = vpop.f32.mrb[0].mxu0
        %v998 = vadd.f32 %v735, %v997
        %999 = vmatprep.mubr.f32.mxu0 0.0
        %1000 = vmatmul.mubr.f32.gmra.mrb[0].mxu0 %v496
        %v1001 = vpop.f32.mrb[0].mxu0
        %v1002 = vadd.f32 %v739, %v1001
        %v1003 = vpop.f32.mrb[0].mxu0
        %v1004 = vadd.f32 %v741, %v1003
        %1005 = vmatprep.mubr.f32.mxu0 0.0
        %1006 = vmatmul.mubr.f32.gmra.mrb[0].mxu0 %v499
        %v1007 = vpop.f32.mrb[0].mxu0
        %v1008 = vadd.f32 %v745, %v1007
        %v1009 = vpop.f32.mrb[0].mxu0
        %v1010 = vadd.f32 %v747, %v1009
        %1011 = vmatprep.mubr.f32.mxu0 0.0
        %1012 = vmatmul.mubr.f32.gmra.mrb[0].mxu0 %v502
        %v1013 = vpop.f32.mrb[0].mxu0
        %v1014 = vadd.f32 %v751, %v1013
        %v1015 = vpop.f32.mrb[0].mxu0
        %v1016 = vadd.f32 %v753, %v1015
        %1017 = vmatprep.mubr.f32.mxu0 0.0
        %1018 = vmatmul.mubr.f32.gmra.mrb[0].mxu0 %v505
        %v1019 = vpop.f32.mrb[0].mxu0
        %v1020 = vadd.f32 %v757, %v1019
        %v1021 = vpop.f32.mrb[0].mxu0
        %v1022 = vadd.f32 %v759, %v1021
        %1023 = vmatprep.mubr.f32.mxu0 0.0
        %1024 = vmatmul.mubr.f32.gmra.mrb[0].mxu0 %v508
        %v1025 = vpop.f32.mrb[0].mxu0
        %v1026 = vadd.f32 %v763, %v1025
        %v1027 = vpop.f32.mrb[0].mxu0
        %v1028 = vadd.f32 %v765, %v1027
        %1029 = vmatprep.mubr.f32.mxu0 0.0
        %1030 = vmatmul.mubr.f32.gmra.mrb[0].mxu0 %v511
        %v1031 = vpop.f32.mrb[0].mxu0
        %v1032 = vadd.f32 %v769, %v1031
        %v1033 = vpop.f32.mrb[0].mxu0
        %v1034 = vadd.f32 %v771, %v1033
        %1035 = vmatprep.mubr.f32.mxu0 0.0
        %1036 = vmatmul.mubr.f32.gmra.mrb[0].mxu0 %v514
        %v1037 = vpop.f32.mrb[0].mxu0
        %v1038 = vadd.f32 %v775, %v1037
        %v1039 = vpop.f32.mrb[0].mxu0
        %v1040 = vadd.f32 %v777, %v1039
        %1041 = vdwg.mxu0
        %v1042 = vmax.f32 %v846, 0.0
        %v1043 = vmax.f32 %v848, 0.0
        %v1044 = vmax.f32 %v852, 0.0
        %v1045 = vmax.f32 %v854, 0.0
        %v1046 = vmax.f32 %v858, 0.0
        %v1047 = vmax.f32 %v860, 0.0
        %v1048 = vmax.f32 %v864, 0.0
        %v1049 = vmax.f32 %v866, 0.0
        %v1050 = vmax.f32 %v870, 0.0
        %v1051 = vmax.f32 %v872, 0.0
        %v1052 = vmax.f32 %v876, 0.0
        %v1053 = vmax.f32 %v878, 0.0
        %v1054 = vmax.f32 %v882, 0.0
        %v1055 = vmax.f32 %v884, 0.0
        %v1056 = vmax.f32 %v888, 0.0
        %v1057 = vmax.f32 %v890, 0.0
        %v1058 = vmax.f32 %v894, 0.0
        %v1059 = vmax.f32 %v896, 0.0
        %v1060 = vmax.f32 %v900, 0.0
        %v1061 = vmax.f32 %v902, 0.0
        %v1062 = vmax.f32 %v906, 0.0
        %v1063 = vmax.f32 %v908, 0.0
        %v1064 = vmax.f32 %v912, 0.0
        %v1065 = vmax.f32 %v914, 0.0
        %v1066 = vmax.f32 %v918, 0.0
        %v1067 = vmax.f32 %v920, 0.0
        %v1068 = vmax.f32 %v924, 0.0
        %v1069 = vmax.f32 %v926, 0.0
        %v1070 = vmax.f32 %v930, 0.0
        %v1071 = vmax.f32 %v932, 0.0
        %v1072 = vmax.f32 %v936, 0.0
        %v1073 = vmax.f32 %v938, 0.0
        %v1074 = vmax.f32 %v942, 0.0
        %v1075 = vmax.f32 %v944, 0.0
        %v1076 = vmax.f32 %v948, 0.0
        %v1077 = vmax.f32 %v950, 0.0
        %v1078 = vmax.f32 %v954, 0.0
        %v1079 = vmax.f32 %v956, 0.0
        %v1080 = vmax.f32 %v960, 0.0
        %v1081 = vmax.f32 %v962, 0.0
        %v1082 = vmax.f32 %v966, 0.0
        %v1083 = vmax.f32 %v968, 0.0
        %v1084 = vmax.f32 %v972, 0.0
        %v1085 = vmax.f32 %v974, 0.0
        %v1086 = vmax.f32 %v978, 0.0
        %v1087 = vmax.f32 %v980, 0.0
        %v1088 = vmax.f32 %v984, 0.0
        %v1089 = vmax.f32 %v986, 0.0
        %v1090 = vmax.f32 %v990, 0.0
        %v1091 = vmax.f32 %v992, 0.0
        %v1092 = vmax.f32 %v996, 0.0
        %v1093 = vmax.f32 %v998, 0.0
        %v1094 = vmax.f32 %v1002, 0.0
        %v1095 = vmax.f32 %v1004, 0.0
        %v1096 = vmax.f32 %v1008, 0.0
        %v1097 = vmax.f32 %v1010, 0.0
        %v1098 = vmax.f32 %v1014, 0.0
        %v1099 = vmax.f32 %v1016, 0.0
        %v1100 = vmax.f32 %v1020, 0.0
        %v1101 = vmax.f32 %v1022, 0.0
        %v1102 = vmax.f32 %v1026, 0.0
        %v1103 = vmax.f32 %v1028, 0.0
        %v1104 = vmax.f32 %v1032, 0.0
        %v1105 = vmax.f32 %v1034, 0.0
        %v1106 = vmax.f32 %v1038, 0.0
        %v1107 = vmax.f32 %v1040, 0.0
        %v1108 = vld [vmem:[%s2] sm:$0xff]
        %v1109 = vld [vmem:[%s2 + $0x8] sm:$0xff]
        %v1110 = vld [vmem:[%s2 + $0x10] sm:$0xff]
        %v1111 = vld [vmem:[%s2 + $0x18] sm:$0xff]
        %v1112 = vld [vmem:[%s2 + $0x20] sm:$0xff]
        %v1113 = vld [vmem:[%s2 + $0x28] sm:$0xff]
        %v1114 = vld [vmem:[%s2 + $0x30] sm:$0xff]
        %v1115 = vld [vmem:[%s2 + $0x38] sm:$0xff]
        %v1116 = vld [vmem:[%s2 + $0x40] sm:$0xff]
        %v1117 = vld [vmem:[%s2 + $0x48] sm:$0xff]
        %v1118 = vld [vmem:[%s2 + $0x50] sm:$0xff]
        %v1119 = vld [vmem:[%s2 + $0x58] sm:$0xff]
        %v1120 = vld [vmem:[%s2 + $0x60] sm:$0xff]
        %v1121 = vld [vmem:[%s2 + $0x68] sm:$0xff]
        %v1122 = vld [vmem:[%s2 + $0x70] sm:$0xff]
        %v1123 = vld [vmem:[%s2 + $0x78] sm:$0xff]
        %v1124 = vld [vmem:[%s2 + $0x80] sm:$0xff]
        %v1125 = vld [vmem:[%s2 + $0x88] sm:$0xff]
        %v1126 = vld [vmem:[%s2 + $0x90] sm:$0xff]
        %v1127 = vld [vmem:[%s2 + $0x98] sm:$0xff]
        %v1128 = vld [vmem:[%s2 + $0xa0] sm:$0xff]
        %v1129 = vld [vmem:[%s2 + $0xa8] sm:$0xff]
        %v1130 = vld [vmem:[%s2 + $0xb0] sm:$0xff]
        %v1131 = vld [vmem:[%s2 + $0xb8] sm:$0xff]
        %v1132 = vld [vmem:[%s2 + $0xc0] sm:$0xff]
        %v1133 = vld [vmem:[%s2 + $0xc8] sm:$0xff]
        %v1134 = vld [vmem:[%s2 + $0xd0] sm:$0xff]
        %v1135 = vld [vmem:[%s2 + $0xd8] sm:$0xff]
        %v1136 = vld [vmem:[%s2 + $0xe0] sm:$0xff]
        %v1137 = vld [vmem:[%s2 + $0xe8] sm:$0xff]
        %v1138 = vld [vmem:[%s2 + $0xf0] sm:$0xff]
        %v1139 = vld [vmem:[%s2 + $0xf8] sm:$0xff]
        %v1140 = vld [vmem:[%s2 + $0x100] sm:$0xff]
        %v1141 = vld [vmem:[%s2 + $0x108] sm:$0xff]
        %v1142 = vld [vmem:[%s2 + $0x110] sm:$0xff]
        %v1143 = vld [vmem:[%s2 + $0x118] sm:$0xff]
        %v1144 = vld [vmem:[%s2 + $0x120] sm:$0xff]
        %v1145 = vld [vmem:[%s2 + $0x128] sm:$0xff]
        %v1146 = vld [vmem:[%s2 + $0x130] sm:$0xff]
        %v1147 = vld [vmem:[%s2 + $0x138] sm:$0xff]
        %v1148 = vld [vmem:[%s2 + $0x140] sm:$0xff]
        %v1149 = vld [vmem:[%s2 + $0x148] sm:$0xff]
        %v1150 = vld [vmem:[%s2 + $0x150] sm:$0xff]
        %v1151 = vld [vmem:[%s2 + $0x158] sm:$0xff]
        %v1152 = vld [vmem:[%s2 + $0x160] sm:$0xff]
        %v1153 = vld [vmem:[%s2 + $0x168] sm:$0xff]
        %v1154 = vld [vmem:[%s2 + $0x170] sm:$0xff]
        %v1155 = vld [vmem:[%s2 + $0x178] sm:$0xff]
        %v1157 = vsel %vm416, %v1110, 0
        %v1160 = vsel %vm416, %v1113, 0
        %v1163 = vsel %vm416, %v1116, 0
        %v1166 = vsel %vm416, %v1119, 0
        %v1169 = vsel %vm416, %v1122, 0
        %v1172 = vsel %vm416, %v1125, 0
        %v1175 = vsel %vm416, %v1128, 0
        %v1178 = vsel %vm416, %v1131, 0
        %v1181 = vsel %vm416, %v1134, 0
        %v1184 = vsel %vm416, %v1137, 0
        %v1187 = vsel %vm416, %v1140, 0
        %v1190 = vsel %vm416, %v1143, 0
        %v1193 = vsel %vm416, %v1146, 0
        %v1196 = vsel %vm416, %v1149, 0
        %v1199 = vsel %vm416, %v1152, 0
        %v1202 = vsel %vm416, %v1155, 0
        %1204 = vmatprep.subr.mxu0 %v1043
        %1205 = vmatpush1.msra.mxu0 %v1042
        %1206 = vmatprep.subr.mxu0 %v1045
        %1207 = vmatpush1.msra.mxu0 %v1044
        %1208 = vmatprep.subr.mxu0 %v1047
        %1209 = vmatpush1.msra.mxu0 %v1046
        %1210 = vmatprep.subr.mxu0 %v1049
        %1211 = vmatpush1.msra.mxu0 %v1048
        %1212 = vmatprep.subr.mxu0 %v1051
        %1213 = vmatpush1.msra.mxu0 %v1050
        %1214 = vmatprep.subr.mxu0 %v1053
        %1215 = vmatpush1.msra.mxu0 %v1052
        %1216 = vmatprep.subr.mxu0 %v1055
        %1217 = vmatpush1.msra.mxu0 %v1054
        %1218 = vmatprep.subr.mxu0 %v1057
        %1219 = vmatpush1.msra.mxu0 %v1056
        %1220 = vmatprep.subr.mxu0 %v1059
        %1221 = vmatpush1.msra.mxu0 %v1058
        %1222 = vmatprep.subr.mxu0 %v1061
        %1223 = vmatpush1.msra.mxu0 %v1060
        %1224 = vmatprep.subr.mxu0 %v1063
        %1225 = vmatpush1.msra.mxu0 %v1062
        %1226 = vmatprep.subr.mxu0 %v1065
        %1227 = vmatpush1.msra.mxu0 %v1064
        %1228 = vmatprep.subr.mxu0 %v1067
        %1229 = vmatpush1.msra.mxu0 %v1066
        %1230 = vmatprep.subr.mxu0 %v1069
        %1231 = vmatpush1.msra.mxu0 %v1068
        %1232 = vmatprep.subr.mxu0 %v1071
        %1233 = vmatpush1.msra.mxu0 %v1070
        %1234 = vmatprep.subr.mxu0 %v1073
        %1235 = vmatpush1.msra.mxu0 %v1072
        %1236 = vmatprep.subr.mxu0 %v1075
        %1237 = vmatpush1.msra.mxu0 %v1074
        %1238 = vmatprep.subr.mxu0 %v1077
        %1239 = vmatpush1.msra.mxu0 %v1076
        %1240 = vmatprep.subr.mxu0 %v1079
        %1241 = vmatpush1.msra.mxu0 %v1078
        %1242 = vmatprep.subr.mxu0 %v1081
        %1243 = vmatpush1.msra.mxu0 %v1080
        %1244 = vmatprep.subr.mxu0 %v1083
        %1245 = vmatpush1.msra.mxu0 %v1082
        %1246 = vmatprep.subr.mxu0 %v1085
        %1247 = vmatpush1.msra.mxu0 %v1084
        %1248 = vmatprep.subr.mxu0 %v1087
        %1249 = vmatpush1.msra.mxu0 %v1086
        %1250 = vmatprep.subr.mxu0 %v1089
        %1251 = vmatpush1.msra.mxu0 %v1088
        %1252 = vmatprep.subr.mxu0 %v1091
        %1253 = vmatpush1.msra.mxu0 %v1090
        %1254 = vmatprep.subr.mxu0 %v1093
        %1255 = vmatpush1.msra.mxu0 %v1092
        %1256 = vmatprep.subr.mxu0 %v1095
        %1257 = vmatpush1.msra.mxu0 %v1094
        %1258 = vmatprep.subr.mxu0 %v1097
        %1259 = vmatpush1.msra.mxu0 %v1096
        %1260 = vmatprep.subr.mxu0 %v1099
        %1261 = vmatpush1.msra.mxu0 %v1098
        %1262 = vmatprep.subr.mxu0 %v1101
        %1263 = vmatpush1.msra.mxu0 %v1100
        %1264 = vmatprep.subr.mxu0 %v1103
        %1265 = vmatpush1.msra.mxu0 %v1102
        %1266 = vmatprep.subr.mxu0 %v1105
        %1267 = vmatpush1.msra.mxu0 %v1104
        %1268 = vmatprep.mubr.f32.mxu0 %v1109
        %1269 = vmatmul.mubr.f32.gmra.mrb[0].mxu0 %v1108
        %v1270 = vpop.f32.mrb[0].mxu0
        %v1271 = vadd.f32 0.0, %v1270
        %v1272 = vpop.f32.mrb[0].mxu0
        %v1273 = vadd.f32 0.0, %v1272
        %1274 = vmatprep.mubr.f32.mxu0 %v1112
        %1275 = vmatmul.mubr.f32.gmra.mrb[0].mxu0 %v1111
        %v1276 = vpop.f32.mrb[0].mxu0
        %v1277 = vadd.f32 0.0, %v1276
        %v1278 = vpop.f32.mrb[0].mxu0
        %v1279 = vadd.f32 0.0, %v1278
        %1280 = vmatprep.mubr.f32.mxu0 %v1115
        %1281 = vmatmul.mubr.f32.gmra.mrb[0].mxu0 %v1114
        %v1282 = vpop.f32.mrb[0].mxu0
        %v1283 = vadd.f32 0.0, %v1282
        %v1284 = vpop.f32.mrb[0].mxu0
        %v1285 = vadd.f32 0.0, %v1284
        %1286 = vmatprep.mubr.f32.mxu0 %v1118
        %1287 = vmatmul.mubr.f32.gmra.mrb[0].mxu0 %v1117
        %v1288 = vpop.f32.mrb[0].mxu0
        %v1289 = vadd.f32 0.0, %v1288
        %v1290 = vpop.f32.mrb[0].mxu0
        %v1291 = vadd.f32 0.0, %v1290
        %1292 = vmatprep.mubr.f32.mxu0 %v1121
        %1293 = vmatmul.mubr.f32.gmra.mrb[0].mxu0 %v1120
        %v1294 = vpop.f32.mrb[0].mxu0
        %v1295 = vadd.f32 0.0, %v1294
        %v1296 = vpop.f32.mrb[0].mxu0
        %v1297 = vadd.f32 0.0, %v1296
        %1298 = vmatprep.mubr.f32.mxu0 %v1124
        %1299 = vmatmul.mubr.f32.gmra.mrb[0].mxu0 %v1123
        %v1300 = vpop.f32.mrb[0].mxu0
        %v1301 = vadd.f32 0.0, %v1300
        %v1302 = vpop.f32.mrb[0].mxu0
        %v1303 = vadd.f32 0.0, %v1302
        %1304 = vmatprep.mubr.f32.mxu0 %v1127
        %1305 = vmatmul.mubr.f32.gmra.mrb[0].mxu0 %v1126
        %v1306 = vpop.f32.mrb[0].mxu0
        %v1307 = vadd.f32 0.0, %v1306
        %v1308 = vpop.f32.mrb[0].mxu0
        %v1309 = vadd.f32 0.0, %v1308
        %1310 = vmatprep.mubr.f32.mxu0 %v1130
        %1311 = vmatmul.mubr.f32.gmra.mrb[0].mxu0 %v1129
        %v1312 = vpop.f32.mrb[0].mxu0
        %v1313 = vadd.f32 0.0, %v1312
        %v1314 = vpop.f32.mrb[0].mxu0
        %v1315 = vadd.f32 0.0, %v1314
        %1316 = vmatprep.mubr.f32.mxu0 %v1133
        %1317 = vmatmul.mubr.f32.gmra.mrb[0].mxu0 %v1132
        %v1318 = vpop.f32.mrb[0].mxu0
        %v1319 = vadd.f32 0.0, %v1318
        %v1320 = vpop.f32.mrb[0].mxu0
        %v1321 = vadd.f32 0.0, %v1320
        %1322 = vmatprep.mubr.f32.mxu0 %v1136
        %1323 = vmatmul.mubr.f32.gmra.mrb[0].mxu0 %v1135
        %v1324 = vpop.f32.mrb[0].mxu0
        %v1325 = vadd.f32 0.0, %v1324
        %v1326 = vpop.f32.mrb[0].mxu0
        %v1327 = vadd.f32 0.0, %v1326
        %1328 = vmatprep.mubr.f32.mxu0 %v1139
        %1329 = vmatmul.mubr.f32.gmra.mrb[0].mxu0 %v1138
        %v1330 = vpop.f32.mrb[0].mxu0
        %v1331 = vadd.f32 0.0, %v1330
        %v1332 = vpop.f32.mrb[0].mxu0
        %v1333 = vadd.f32 0.0, %v1332
        %1334 = vmatprep.mubr.f32.mxu0 %v1142
        %1335 = vmatmul.mubr.f32.gmra.mrb[0].mxu0 %v1141
        %v1336 = vpop.f32.mrb[0].mxu0
        %v1337 = vadd.f32 0.0, %v1336
        %v1338 = vpop.f32.mrb[0].mxu0
        %v1339 = vadd.f32 0.0, %v1338
        %1340 = vmatprep.mubr.f32.mxu0 %v1145
        %1341 = vmatmul.mubr.f32.gmra.mrb[0].mxu0 %v1144
        %v1342 = vpop.f32.mrb[0].mxu0
        %v1343 = vadd.f32 0.0, %v1342
        %v1344 = vpop.f32.mrb[0].mxu0
        %v1345 = vadd.f32 0.0, %v1344
        %1346 = vmatprep.mubr.f32.mxu0 %v1148
        %1347 = vmatmul.mubr.f32.gmra.mrb[0].mxu0 %v1147
        %v1348 = vpop.f32.mrb[0].mxu0
        %v1349 = vadd.f32 0.0, %v1348
        %v1350 = vpop.f32.mrb[0].mxu0
        %v1351 = vadd.f32 0.0, %v1350
        %1352 = vmatprep.mubr.f32.mxu0 %v1151
        %1353 = vmatmul.mubr.f32.gmra.mrb[0].mxu0 %v1150
        %v1354 = vpop.f32.mrb[0].mxu0
        %v1355 = vadd.f32 0.0, %v1354
        %v1356 = vpop.f32.mrb[0].mxu0
        %v1357 = vadd.f32 0.0, %v1356
        %1358 = vmatprep.mubr.f32.mxu0 %v1154
        %1359 = vmatmul.mubr.f32.gmra.mrb[0].mxu0 %v1153
        %v1360 = vpop.f32.mrb[0].mxu0
        %v1361 = vadd.f32 0.0, %v1360
        %v1362 = vpop.f32.mrb[0].mxu0
        %v1363 = vadd.f32 0.0, %v1362
        %1364 = vdwg.mxu0
        %1365 = vmatprep.subr.mxu0 %v1107
        %1366 = vmatpush1.msra.mxu0 %v1106
        %1367 = vmatprep.subr.mxu0 0.0
        %1368 = vmatpush1.msra.mxu0 0.0
        %1369 = vmatprep.subr.mxu0 0.0
        %1370 = vmatpush1.msra.mxu0 0.0
        %1371 = vmatprep.subr.mxu0 0.0
        %1372 = vmatpush1.msra.mxu0 0.0
        %1373 = vmatprep.subr.mxu0 0.0
        %1374 = vmatpush1.msra.mxu0 0.0
        %1375 = vmatprep.subr.mxu0 0.0
        %1376 = vmatpush1.msra.mxu0 0.0
        %1377 = vmatprep.subr.mxu0 0.0
        %1378 = vmatpush1.msra.mxu0 0.0
        %1379 = vmatprep.subr.mxu0 0.0
        %1380 = vmatpush1.msra.mxu0 0.0
        %1381 = vmatprep.subr.mxu0 0.0
        %1382 = vmatpush1.msra.mxu0 0.0
        %1383 = vmatprep.subr.mxu0 0.0
        %1384 = vmatpush1.msra.mxu0 0.0
        %1385 = vmatprep.subr.mxu0 0.0
        %1386 = vmatpush1.msra.mxu0 0.0
        %1387 = vmatprep.subr.mxu0 0.0
        %1388 = vmatpush1.msra.mxu0 0.0
        %1389 = vmatprep.subr.mxu0 0.0
        %1390 = vmatpush1.msra.mxu0 0.0
        %1391 = vmatprep.subr.mxu0 0.0
        %1392 = vmatpush1.msra.mxu0 0.0
        %1393 = vmatprep.subr.mxu0 0.0
        %1394 = vmatpush1.msra.mxu0 0.0
        %1395 = vmatprep.subr.mxu0 0.0
        %1396 = vmatpush1.msra.mxu0 0.0
        %1397 = vmatprep.subr.mxu0 0.0
        %1398 = vmatpush1.msra.mxu0 0.0
        %1399 = vmatprep.subr.mxu0 0.0
        %1400 = vmatpush1.msra.mxu0 0.0
        %1401 = vmatprep.subr.mxu0 0.0
        %1402 = vmatpush1.msra.mxu0 0.0
        %1403 = vmatprep.subr.mxu0 0.0
        %1404 = vmatpush1.msra.mxu0 0.0
        %1405 = vmatprep.subr.mxu0 0.0
        %1406 = vmatpush1.msra.mxu0 0.0
        %1407 = vmatprep.subr.mxu0 0.0
        %1408 = vmatpush1.msra.mxu0 0.0
        %1409 = vmatprep.subr.mxu0 0.0
        %1410 = vmatpush1.msra.mxu0 0.0
        %1411 = vmatprep.subr.mxu0 0.0
        %1412 = vmatpush1.msra.mxu0 0.0
        %1413 = vmatprep.subr.mxu0 0.0
        %1414 = vmatpush1.msra.mxu0 0.0
        %1415 = vmatprep.subr.mxu0 0.0
        %1416 = vmatpush1.msra.mxu0 0.0
        %1417 = vmatprep.subr.mxu0 0.0
        %1418 = vmatpush1.msra.mxu0 0.0
        %1419 = vmatprep.subr.mxu0 0.0
        %1420 = vmatpush1.msra.mxu0 0.0
        %1421 = vmatprep.subr.mxu0 0.0
        %1422 = vmatpush1.msra.mxu0 0.0
        %1423 = vmatprep.subr.mxu0 0.0
        %1424 = vmatpush1.msra.mxu0 0.0
        %1425 = vmatprep.subr.mxu0 0.0
        %1426 = vmatpush1.msra.mxu0 0.0
        %1427 = vmatprep.subr.mxu0 0.0
        %1428 = vmatpush1.msra.mxu0 0.0
        %1429 = vmatprep.mubr.f32.mxu0 0.0
        %1430 = vmatmul.mubr.f32.gmra.mrb[0].mxu0 %v1157
        %v1431 = vpop.f32.mrb[0].mxu0
        %v1432 = vadd.f32 %v1271, %v1431
        %v1433 = vpop.f32.mrb[0].mxu0
        %v1434 = vadd.f32 %v1273, %v1433
        %1435 = vmatprep.mubr.f32.mxu0 0.0
        %1436 = vmatmul.mubr.f32.gmra.mrb[0].mxu0 %v1160
        %v1437 = vpop.f32.mrb[0].mxu0
        %v1438 = vadd.f32 %v1277, %v1437
        %v1439 = vpop.f32.mrb[0].mxu0
        %v1440 = vadd.f32 %v1279, %v1439
        %1441 = vmatprep.mubr.f32.mxu0 0.0
        %1442 = vmatmul.mubr.f32.gmra.mrb[0].mxu0 %v1163
        %v1443 = vpop.f32.mrb[0].mxu0
        %v1444 = vadd.f32 %v1283, %v1443
        %v1445 = vpop.f32.mrb[0].mxu0
        %v1446 = vadd.f32 %v1285, %v1445
        %1447 = vmatprep.mubr.f32.mxu0 0.0
        %1448 = vmatmul.mubr.f32.gmra.mrb[0].mxu0 %v1166
        %v1449 = vpop.f32.mrb[0].mxu0
        %v1450 = vadd.f32 %v1289, %v1449
        %v1451 = vpop.f32.mrb[0].mxu0
        %v1452 = vadd.f32 %v1291, %v1451
        %1453 = vmatprep.mubr.f32.mxu0 0.0
        %1454 = vmatmul.mubr.f32.gmra.mrb[0].mxu0 %v1169
        %v1455 = vpop.f32.mrb[0].mxu0
        %v1456 = vadd.f32 %v1295, %v1455
        %v1457 = vpop.f32.mrb[0].mxu0
        %v1458 = vadd.f32 %v1297, %v1457
        %1459 = vmatprep.mubr.f32.mxu0 0.0
        %1460 = vmatmul.mubr.f32.gmra.mrb[0].mxu0 %v1172
        %v1461 = vpop.f32.mrb[0].mxu0
        %v1462 = vadd.f32 %v1301, %v1461
        %v1463 = vpop.f32.mrb[0].mxu0
        %v1464 = vadd.f32 %v1303, %v1463
        %1465 = vmatprep.mubr.f32.mxu0 0.0
        %1466 = vmatmul.mubr.f32.gmra.mrb[0].mxu0 %v1175
        %v1467 = vpop.f32.mrb[0].mxu0
        %v1468 = vadd.f32 %v1307, %v1467
        %v1469 = vpop.f32.mrb[0].mxu0
        %v1470 = vadd.f32 %v1309, %v1469
        %1471 = vmatprep.mubr.f32.mxu0 0.0
        %1472 = vmatmul.mubr.f32.gmra.mrb[0].mxu0 %v1178
        %v1473 = vpop.f32.mrb[0].mxu0
        %v1474 = vadd.f32 %v1313, %v1473
        %v1475 = vpop.f32.mrb[0].mxu0
        %v1476 = vadd.f32 %v1315, %v1475
        %1477 = vmatprep.mubr.f32.mxu0 0.0
        %1478 = vmatmul.mubr.f32.gmra.mrb[0].mxu0 %v1181
        %v1479 = vpop.f32.mrb[0].mxu0
        %v1480 = vadd.f32 %v1319, %v1479
        %v1481 = vpop.f32.mrb[0].mxu0
        %v1482 = vadd.f32 %v1321, %v1481
        %1483 = vmatprep.mubr.f32.mxu0 0.0
        %1484 = vmatmul.mubr.f32.gmra.mrb[0].mxu0 %v1184
        %v1485 = vpop.f32.mrb[0].mxu0
        %v1486 = vadd.f32 %v1325, %v1485
        %v1487 = vpop.f32.mrb[0].mxu0
        %v1488 = vadd.f32 %v1327, %v1487
        %1489 = vmatprep.mubr.f32.mxu0 0.0
        %1490 = vmatmul.mubr.f32.gmra.mrb[0].mxu0 %v1187
        %v1491 = vpop.f32.mrb[0].mxu0
        %v1492 = vadd.f32 %v1331, %v1491
        %v1493 = vpop.f32.mrb[0].mxu0
        %v1494 = vadd.f32 %v1333, %v1493
        %1495 = vmatprep.mubr.f32.mxu0 0.0
        %1496 = vmatmul.mubr.f32.gmra.mrb[0].mxu0 %v1190
        %v1497 = vpop.f32.mrb[0].mxu0
        %v1498 = vadd.f32 %v1337, %v1497
        %v1499 = vpop.f32.mrb[0].mxu0
        %v1500 = vadd.f32 %v1339, %v1499
        %1501 = vmatprep.mubr.f32.mxu0 0.0
        %1502 = vmatmul.mubr.f32.gmra.mrb[0].mxu0 %v1193
        %v1503 = vpop.f32.mrb[0].mxu0
        %v1504 = vadd.f32 %v1343, %v1503
        %v1505 = vpop.f32.mrb[0].mxu0
        %v1506 = vadd.f32 %v1345, %v1505
        %1507 = vmatprep.mubr.f32.mxu0 0.0
        %1508 = vmatmul.mubr.f32.gmra.mrb[0].mxu0 %v1196
        %v1509 = vpop.f32.mrb[0].mxu0
        %v1510 = vadd.f32 %v1349, %v1509
        %v1511 = vpop.f32.mrb[0].mxu0
        %v1512 = vadd.f32 %v1351, %v1511
        %1513 = vmatprep.mubr.f32.mxu0 0.0
        %1514 = vmatmul.mubr.f32.gmra.mrb[0].mxu0 %v1199
        %v1515 = vpop.f32.mrb[0].mxu0
        %v1516 = vadd.f32 %v1355, %v1515
        %v1517 = vpop.f32.mrb[0].mxu0
        %v1518 = vadd.f32 %v1357, %v1517
        %1519 = vmatprep.mubr.f32.mxu0 0.0
        %1520 = vmatmul.mubr.f32.gmra.mrb[0].mxu0 %v1202
        %v1521 = vpop.f32.mrb[0].mxu0
        %v1522 = vadd.f32 %v1361, %v1521
        %v1523 = vpop.f32.mrb[0].mxu0
        %v1524 = vadd.f32 %v1363, %v1523
        %1525 = vdwg.mxu0
        %v1526 = vmax.f32 %v1432, 0.0
        %v1527 = vmax.f32 %v1434, 0.0
        %v1528 = vmax.f32 %v1438, 0.0
        %v1529 = vmax.f32 %v1440, 0.0
        %v1530 = vmax.f32 %v1444, 0.0
        %v1531 = vmax.f32 %v1446, 0.0
        %v1532 = vmax.f32 %v1450, 0.0
        %v1533 = vmax.f32 %v1452, 0.0
        %v1534 = vmax.f32 %v1456, 0.0
        %v1535 = vmax.f32 %v1458, 0.0
        %v1536 = vmax.f32 %v1462, 0.0
        %v1537 = vmax.f32 %v1464, 0.0
        %v1538 = vmax.f32 %v1468, 0.0
        %v1539 = vmax.f32 %v1470, 0.0
        %v1540 = vmax.f32 %v1474, 0.0
        %v1541 = vmax.f32 %v1476, 0.0
        %v1542 = vmax.f32 %v1480, 0.0
        %v1543 = vmax.f32 %v1482, 0.0
        %v1544 = vmax.f32 %v1486, 0.0
        %v1545 = vmax.f32 %v1488, 0.0
        %v1546 = vmax.f32 %v1492, 0.0
        %v1547 = vmax.f32 %v1494, 0.0
        %v1548 = vmax.f32 %v1498, 0.0
        %v1549 = vmax.f32 %v1500, 0.0
        %v1550 = vmax.f32 %v1504, 0.0
        %v1551 = vmax.f32 %v1506, 0.0
        %v1552 = vmax.f32 %v1510, 0.0
        %v1553 = vmax.f32 %v1512, 0.0
        %v1554 = vmax.f32 %v1516, 0.0
        %v1555 = vmax.f32 %v1518, 0.0
        %v1556 = vmax.f32 %v1522, 0.0
        %v1557 = vmax.f32 %v1524, 0.0
        %v1558 = vld [vmem:[%s3] sm:$0xff]
        %v1559 = vld [vmem:[%s3 + $0x8] sm:$0xff]
        %v1560 = vld [vmem:[%s3 + $0x10] sm:$0xff]
        %v1561 = vld [vmem:[%s3 + $0x18] sm:$0xff]
        %v1562 = vld [vmem:[%s3 + $0x20] sm:$0xff]
        %v1563 = vld [vmem:[%s3 + $0x28] sm:$0xff]
        %v1564 = vld [vmem:[%s3 + $0x30] sm:$0xff]
        %v1565 = vld [vmem:[%s3 + $0x38] sm:$0xff]
        %v1566 = vld [vmem:[%s3 + $0x40] sm:$0xff]
        %v1567 = vld [vmem:[%s3 + $0x48] sm:$0xff]
        %v1568 = vld [vmem:[%s3 + $0x50] sm:$0xff]
        %v1569 = vld [vmem:[%s3 + $0x58] sm:$0xff]
        %v1570 = vld [vmem:[%s3 + $0x60] sm:$0xff]
        %v1571 = vld [vmem:[%s3 + $0x68] sm:$0xff]
        %v1572 = vld [vmem:[%s3 + $0x70] sm:$0xff]
        %v1573 = vld [vmem:[%s3 + $0x78] sm:$0xff]
        %1575 = vset.pattern.permute.xlu0 0
        %1576 = vperm.xlu0 %1575, %v1558
        %v1577 = vpop.permute.xlu0 %1576
        %1580 = vset.pattern.permute.xlu0 0
        %1581 = vperm.xlu0 %1580, %v1559
        %v1582 = vpop.permute.xlu0 %1581
        %1585 = vset.pattern.permute.xlu0 0
        %1586 = vperm.xlu0 %1585, %v1560
        %v1587 = vpop.permute.xlu0 %1586
        %1590 = vset.pattern.permute.xlu0 0
        %1591 = vperm.xlu0 %1590, %v1561
        %v1592 = vpop.permute.xlu0 %1591
        %1595 = vset.pattern.permute.xlu0 0
        %1596 = vperm.xlu0 %1595, %v1562
        %v1597 = vpop.permute.xlu0 %1596
        %1600 = vset.pattern.permute.xlu0 0
        %1601 = vperm.xlu0 %1600, %v1563
        %v1602 = vpop.permute.xlu0 %1601
        %1605 = vset.pattern.permute.xlu0 0
        %1606 = vperm.xlu0 %1605, %v1564
        %v1607 = vpop.permute.xlu0 %1606
        %1610 = vset.pattern.permute.xlu0 0
        %1611 = vperm.xlu0 %1610, %v1565
        %v1612 = vpop.permute.xlu0 %1611
        %1615 = vset.pattern.permute.xlu0 0
        %1616 = vperm.xlu0 %1615, %v1566
        %v1617 = vpop.permute.xlu0 %1616
        %1620 = vset.pattern.permute.xlu0 0
        %1621 = vperm.xlu0 %1620, %v1567
        %v1622 = vpop.permute.xlu0 %1621
        %1625 = vset.pattern.permute.xlu0 0
        %1626 = vperm.xlu0 %1625, %v1568
        %v1627 = vpop.permute.xlu0 %1626
        %1630 = vset.pattern.permute.xlu0 0
        %1631 = vperm.xlu0 %1630, %v1569
        %v1632 = vpop.permute.xlu0 %1631
        %1635 = vset.pattern.permute.xlu0 0
        %1636 = vperm.xlu0 %1635, %v1570
        %v1637 = vpop.permute.xlu0 %1636
        %1640 = vset.pattern.permute.xlu0 0
        %1641 = vperm.xlu0 %1640, %v1571
        %v1642 = vpop.permute.xlu0 %1641
        %1645 = vset.pattern.permute.xlu0 0
        %1646 = vperm.xlu0 %1645, %v1572
        %v1647 = vpop.permute.xlu0 %1646
        %1650 = vset.pattern.permute.xlu0 0
        %1651 = vperm.xlu0 %1650, %v1573
        %v1652 = vpop.permute.xlu0 %1651
        %v1654 = vmul.f32 %v1526, %v1577
        %v1655 = vmul.f32 %v1527, %v1577
        %v1656 = vmul.f32 %v1528, %v1582
        %v1657 = vmul.f32 %v1529, %v1582
        %v1658 = vmul.f32 %v1530, %v1587
        %v1659 = vmul.f32 %v1531, %v1587
        %v1660 = vmul.f32 %v1532, %v1592
        %v1661 = vmul.f32 %v1533, %v1592
        %v1662 = vmul.f32 %v1534, %v1597
        %v1663 = vmul.f32 %v1535, %v1597
        %v1664 = vmul.f32 %v1536, %v1602
        %v1665 = vmul.f32 %v1537, %v1602
        %v1666 = vmul.f32 %v1538, %v1607
        %v1667 = vmul.f32 %v1539, %v1607
        %v1668 = vmul.f32 %v1540, %v1612
        %v1669 = vmul.f32 %v1541, %v1612
        %v1670 = vmul.f32 %v1542, %v1617
        %v1671 = vmul.f32 %v1543, %v1617
        %v1672 = vmul.f32 %v1544, %v1622
        %v1673 = vmul.f32 %v1545, %v1622
        %v1674 = vmul.f32 %v1546, %v1627
        %v1675 = vmul.f32 %v1547, %v1627
        %v1676 = vmul.f32 %v1548, %v1632
        %v1677 = vmul.f32 %v1549, %v1632
        %v1678 = vmul.f32 %v1550, %v1637
        %v1679 = vmul.f32 %v1551, %v1637
        %v1680 = vmul.f32 %v1552, %v1642
        %v1681 = vmul.f32 %v1553, %v1642
        %v1682 = vmul.f32 %v1554, %v1647
        %v1683 = vmul.f32 %v1555, %v1647
        %v1684 = vmul.f32 %v1556, %v1652
        %v1685 = vmul.f32 %v1557, %v1652
        %v1686 = vadd.f32 %v1654, %v1656
        %v1687 = vadd.f32 %v1686, %v1658
        %v1688 = vadd.f32 %v1687, %v1660
        %v1689 = vadd.f32 %v1688, %v1662
        %v1690 = vadd.f32 %v1689, %v1664
        %v1691 = vadd.f32 %v1690, %v1666
        %v1692 = vadd.f32 %v1691, %v1668
        %v1693 = vadd.f32 %v1692, %v1670
        %v1694 = vadd.f32 %v1693, %v1672
        %v1695 = vadd.f32 %v1694, %v1674
        %v1696 = vadd.f32 %v1695, %v1676
        %v1697 = vadd.f32 %v1696, %v1678
        %v1698 = vadd.f32 %v1697, %v1680
        %v1699 = vadd.f32 %v1698, %v1682
        %v1700 = vadd.f32 %v1699, %v1684
        %v1701 = vrot.slane %v1700, 4
        %v1702 = vadd.f32 %v1700, %v1701
        %v1703 = vrot.slane %v1702, 2
        %v1704 = vadd.f32 %v1702, %v1703
        %v1705 = vrot.slane %v1704, 1
        %v1706 = vadd.f32 %v1704, %v1705
        %v1707 = vadd.f32 %v1655, %v1657
        %v1708 = vadd.f32 %v1707, %v1659
        %v1709 = vadd.f32 %v1708, %v1661
        %v1710 = vadd.f32 %v1709, %v1663
        %v1711 = vadd.f32 %v1710, %v1665
        %v1712 = vadd.f32 %v1711, %v1667
        %v1713 = vadd.f32 %v1712, %v1669
        %v1714 = vadd.f32 %v1713, %v1671
        %v1715 = vadd.f32 %v1714, %v1673
        %v1716 = vadd.f32 %v1715, %v1675
        %v1717 = vadd.f32 %v1716, %v1677
        %v1718 = vadd.f32 %v1717, %v1679
        %v1719 = vadd.f32 %v1718, %v1681
        %v1720 = vadd.f32 %v1719, %v1683
        %v1721 = vadd.f32 %v1720, %v1685
        %v1722 = vrot.slane %v1721, 4
        %v1723 = vadd.f32 %v1721, %v1722
        %v1724 = vrot.slane %v1723, 2
        %v1725 = vadd.f32 %v1723, %v1724
        %v1726 = vrot.slane %v1725, 1
        %v1727 = vadd.f32 %v1725, %v1726
        %v1728 = vmax.f32 %v1706, 0.0
        %v1729 = vmax.f32 %v1727, 0.0
        %v1730 = vsub.f32 %v1728, %v1706
        %v1731 = vsub.f32 %v1729, %v1727
        %v1732 = vand.u32 2147483647, %v1706
        %v1733 = vand.u32 2147483647, %v1727
        %v1734 = vsub.f32 0.0, %v1732
        %v1735 = vsub.f32 0.0, %v1733
        %v1736 = vmul.f32 %v1734, 1.442695
        %v1737 = vpow.pop %v1736
        %v1738 = vmul.f32 %v1735, 1.442695
        %v1739 = vpow.pop %v1738
        %v1740 = vadd.f32 %v1737, 1.0
        %v1741 = vlog2.pop %v1740
        %v1742 = vmul.f32 %v1741, 0.6931472
        %v1743 = vmul.f32 -0.5, %v1737
        %v1744 = vadd.f32 %v1743, 1.0
        %v1745 = vmul.f32 %v1744, %v1737
        %v1746 = vand.u32 2147483647, %v1737
        %vm1747 = vcmp.lt.f32.partialorder %v1746, 0.0004427343
        %v1748 = vsel %vm1747, %v1745, %v1742
        %v1749 = vadd.f32 %v1739, 1.0
        %v1750 = vlog2.pop %v1749
        %v1751 = vmul.f32 %v1750, 0.6931472
        %v1752 = vmul.f32 -0.5, %v1739
        %v1753 = vadd.f32 %v1752, 1.0
        %v1754 = vmul.f32 %v1753, %v1739
        %v1755 = vand.u32 2147483647, %v1739
        %vm1756 = vcmp.lt.f32.partialorder %v1755, 0.0004427343
        %v1757 = vsel %vm1756, %v1754, %v1751
        %v1758 = vadd.f32 %v1730, %v1748
        %v1759 = vadd.f32 %v1731, %v1757
        %v1762 = vcombine.low %v1758, %v1759
        %v1764 = vunpack.c.l.s4 1966171168
        %v1765 = vunpack.c.0.s8 %v1764
        %v1766 = vlaneseq
        %v1767 = vshrl.u32 %v1766, 7
        %v1768 = vsub.s32 %v1765, %v1767
        %v1769 = vrot.slane %v1762, %v1768
        %v1771 = vunpack.c.l.s4 1966171168
        %v1772 = vunpack.c.0.s8 %v1771
        %v1773 = vlaneseq
        %v1774 = vshrl.u32 %v1773, 7
        %v1775 = vsub.s32 %v1772, %v1774
        %v1776 = vrot.slane %v1769, %v1775
        %v1778 = vlaneseq
        %vm1779 = vcmp.ge.s32.totalorder %v1778, 0
        %vm1780 = vcmp.lt.s32.totalorder %v1778, 256
        %vm1781 = vmand %vm1779, %vm1780
        %1782 = vst.msk [vmem:[%s248] sm:$0x3] %vm1781, %v1776
        %s1783 = sand.u32 %s135, 1
        %s1784 = scalar_lea.sflag [#allocation4], %s1783
        %s1785 = sand.u32 %s135, 1
        %s1786 = smul.addr %s1785, 2
        %s1787 = scalar_lea.vmem [#allocation7], %s1786
        // Predicated region
        $region45: #{tpu_custom_call.1} parent=35 // pred_check
          %p1788 = pneg %p145
        $region46: #{tpu_custom_call.1} parent=35 // pred_check_branch
          %1790 = sbr.rel (%p1788) target = $region48
        $region47: #{tpu_custom_call.1} parent=35 // pred_region
          %s1791 = smul.u32 2, %s27
          %s1793 = ssub.s32 32, 32
          %1794 = vsyncadd %s1784, %s1793
          %s1795 = smul.addr %s26, 2
          %s1796 = sadd.s32 %s1791, %s1795
          %s1797 = smul.addr %s1796, 16
          %s1798 = scalar_lea.hbm %s4, %s1797
          %s1800 = sshll.u32 %s1787, 4
          %s1801 = int_to_ptr.vmem [resolvable:$true] %s1800
          %1803 = dma.vmem_to_hbm [thread:$0]  %s1801, 32, %s1798, %s1784
        $region48: #{tpu_custom_call.1} parent=35 // pred_fallthru
          _
      $region36: #{tpu_custom_call.1} parent=5 // pred_fallthru
        _
      %p1804 = scmp.le.s32.totalorder 2, %s17
      // Predicated region
      $region49: #{tpu_custom_call.1} parent=5 // pred_check
        %p1805 = pneg %p1804
      $region50: #{tpu_custom_call.1} parent=5 // pred_check_branch
        %1807 = sbr.rel (%p1805) target = $region52
      $region51: #{tpu_custom_call.1} parent=5 // pred_region
        %s1808 = ssub.s32 %s17, 2
        // Predicated region
        $region53: #{tpu_custom_call.1} parent=51 // pred_check
          %p1809 = pneg %p151
        $region54: #{tpu_custom_call.1} parent=51 // pred_check_branch
          %1811 = sbr.rel (%p1809) target = $region56
        $region55: #{tpu_custom_call.1} parent=51 // pred_region
          %s1812 = sand.u32 %s136, 1
          %s1813 = scalar_lea.sflag [#allocation4], %s1812
          %s1814 = sand.u32 %s136, 1
          %s1815 = smul.addr %s1814, 2
          %s1816 = scalar_lea.vmem [#allocation7], %s1815
          %1817 = dma.done %s1813, 32
        $region56: #{tpu_custom_call.1} parent=51 // pred_fallthru
          _
      $region52: #{tpu_custom_call.1} parent=5 // pred_fallthru
        _
    $region6: #{tpu_custom_call.1} parent=1 // loop_footer
      %s21 = sadd.s32 1, %s17
    $region7: #{tpu_custom_call.1} parent=1 // loop_footer_branch
      %16 = sbr.rel target = $region3
    $region8: #{tpu_custom_call.1} parent=1 // loop_exit
      _
    %1818 = vsyncpa [#allocation3], 1
    %s1819 = scalar_lea.sflag [#allocation3], 1
    %1820 = vsyncpa %s1819, 1
    %1821 = vsyncpa [#allocation6], 1
    %1822 = vsyncpa [#allocation4], 1
    %s1823 = scalar_lea.sflag [#allocation4], 1
    %1824 = vsyncpa %s1823, 1

</llo_original>
